<compile_context>
chip_gen: v7x
topology: tpu7x:2x2x1
jax: 0.10.0
libtpu: 0.0.40
codegen_flags: <defaults>
</compile_context>

<pallas_src>
import jax
import jax.numpy as jnp
import numpy as np
from jax.experimental import pallas as pl
from jax.experimental.pallas import tpu as pltpu

LANE = 128      # channel axis padded to a multiple of this (lane-dense stores)
SUBLANE = 8
ROW_ALIGN = 16  # row tiles multiple of 16 -> clean bf16 (16,128) tiling


def _round_up(x, m):
    return (x + m - 1) // m * m


def _cdiv(a, b):
    return -(-a // b)


def _pick_tm(m, cap=512):
    """Row-tile size: multiple of 16, <= cap, and >= 2 tiles when possible so
    the 'parallel' row axis keeps both v7x TensorCores busy.
    # TODO(synk): raise cap to 1024 on v5e/v6e (128 MiB VMEM) via get_tpu_info.
    """
    m16 = _round_up(max(m, 1), ROW_ALIGN)
    if m16 <= cap:
        if m16 >= 2 * ROW_ALIGN:
            return _round_up(_cdiv(m16, 2), ROW_ALIGN)
        return m16
    return cap


def _compiler_params():
    # "parallel" row-tile axis -> sharded across the 2 TensorCores on v7x
    # (harmless on v5e/v6e).  48 MiB scoped VMEM is safe on every generation
    # (v7x has 64 MiB physical); v5e/v6e could go higher.
    return pltpu.CompilerParams(
        dimension_semantics=("parallel",),
        vmem_limit_bytes=48 * 1024 * 1024,
    )


def _cost(mp, k, cp, f32_mats, bf16_mats):
    return pl.CostEstimate(
        flops=2 * mp * k * cp,
        transcendentals=0,
        bytes_accessed=2 * (mp * k + k * cp) + mp * cp * (4 * f32_mats + 2 * bf16_mats),
    )


# ---------------------------------------------------------------------------
# Pallas kernels
# ---------------------------------------------------------------------------
def _lif(leak, thr, t_minus_1, delta, mem_ref, spike_ref, mem_out_ref, spike_out_ref):
    """Leaky-integrate / fire / reset-by-subtraction / spike-time update (f32)."""
    mem_new = leak * mem_ref[...] + delta                 # f32 state math
    fire_b = mem_new > thr                                # == mem/thr - 1 > 0 for thr > 0
    fire = fire_b.astype(jnp.float32)
    mem_out_ref[...] = mem_new - thr * fire
    spike_out_ref[...] = jnp.where(
        fire_b, t_minus_1, spike_ref[...].astype(jnp.float32)
    ).astype(spike_out_ref.dtype)
    return fire


def _stage1_kernel(params_ref, patches_ref, w_ref, mem_ref, spike_ref, mask_ref,
                   out_ref, mem_out_ref, spike_out_ref, psum_ref):
    """conv1 (bf16 matmul) + LIF + fire + dropout mask + partial ops sum."""
    leak = params_ref[0]
    thr = params_ref[1]
    t_m1 = params_ref[2]
    delta = jnp.dot(patches_ref[...], w_ref[...],
                    preferred_element_type=jnp.float32)
    fire = _lif(leak, thr, t_m1, delta, mem_ref, spike_ref,
                mem_out_ref, spike_out_ref)
    out_masked = fire * mask_ref[...].astype(jnp.float32)
    out_ref[...] = out_masked.astype(out_ref.dtype)
    # Per-tile partial column sums -> ops[pos+1] without a second HBM pass.
    colsum = jnp.sum(out_masked, axis=0, keepdims=True)
    psum_ref[...] = jnp.broadcast_to(colsum, psum_ref.shape)


def _stage2_proj_kernel(params_ref, patches_ref, w_ref, id_ref, wid_ref,
                        mem_ref, spike_ref, out_ref, mem_out_ref, spike_out_ref):
    """conv2 matmul + 1x1-projection shortcut as a second small matmul + LIF."""
    leak = params_ref[0]
    thr = params_ref[1]
    t_m1 = params_ref[2]
    delta = jnp.dot(patches_ref[...], w_ref[...],
                    preferred_element_type=jnp.float32)
    delta = delta + jnp.dot(id_ref[...], wid_ref[...],
                            preferred_element_type=jnp.float32)
    fire = _lif(leak, thr, t_m1, delta, mem_ref, spike_ref,
                mem_out_ref, spike_out_ref)
    out_ref[...] = fire.astype(out_ref.dtype)


def _stage2_pass_kernel(params_ref, patches_ref, w_ref, id_ref,
                        mem_ref, spike_ref, out_ref, mem_out_ref, spike_out_ref):
    """conv2 matmul + identity pass-through shortcut (elementwise add) + LIF."""
    leak = params_ref[0]
    thr = params_ref[1]
    t_m1 = params_ref[2]
    delta = jnp.dot(patches_ref[...], w_ref[...],
                    preferred_element_type=jnp.float32)
    delta = delta + id_ref[...].astype(jnp.float32)
    fire = _lif(leak, thr, t_m1, delta, mem_ref, spike_ref,
                mem_out_ref, spike_out_ref)
    out_ref[...] = fire.astype(out_ref.dtype)


# ---------------------------------------------------------------------------
# pallas_call wrappers (row-tiled grid, weights resident in VMEM)
# ---------------------------------------------------------------------------
def _run_stage1(params, patches, w, mem, spike, mask, tm):
    mp, k = patches.shape
    cp = w.shape[1]
    ntiles = mp // tm
    row = lambda i: (i, 0)
    const = lambda i: (0, 0)
    out, mem_out, spike_out, psum = pl.pallas_call(
        _stage1_kernel,
        grid=(ntiles,),
        in_specs=[
            pl.BlockSpec(memory_space=pltpu.MemorySpace.SMEM),  # leak/thr/t-1
            pl.BlockSpec((tm, k), row),       # bf16 patches (pipelined)
            pl.BlockSpec((k, cp), const),     # bf16 weight: resident across tiles
            pl.BlockSpec((tm, cp), row),      # f32 membrane
            pl.BlockSpec((tm, cp), row),      # bf16 spike time
            pl.BlockSpec((tm, cp), row),      # bf16 dropout mask
        ],
        out_specs=[
            pl.BlockSpec((tm, cp), row),
            pl.BlockSpec((tm, cp), row),
            pl.BlockSpec((tm, cp), row),
            pl.BlockSpec((SUBLANE, cp), lambda i: (i, 0)),      # partial sums
        ],
        out_shape=[
            jax.ShapeDtypeStruct((mp, cp), jnp.bfloat16),       # spikes * mask
            jax.ShapeDtypeStruct((mp, cp), jnp.float32),        # new membrane
            jax.ShapeDtypeStruct((mp, cp), jnp.bfloat16),       # new spike time
            jax.ShapeDtypeStruct((SUBLANE * ntiles, cp), jnp.float32),
        ],
        input_output_aliases={3: 1, 4: 2},    # mem -> mem_out, spike -> spike_out
        compiler_params=_compiler_params(),
        cost_estimate=_cost(mp, k, cp, 2, 4),
    )(params, patches, w, mem, spike, mask)
    return out, mem_out, spike_out, jnp.sum(psum[::SUBLANE, :])


def _run_stage2_proj(params, patches, w, id_rows, w_id, mem, spike, tm):
    mp, k = patches.shape
    cp = w.shape[1]
    cin = id_rows.shape[1]
    ntiles = mp // tm
    row = lambda i: (i, 0)
    const = lambda i: (0, 0)
    return pl.pallas_call(
        _stage2_proj_kernel,
        grid=(ntiles,),
        in_specs=[
            pl.BlockSpec(memory_space=pltpu.MemorySpace.SMEM),
            pl.BlockSpec((tm, k), row),
            pl.BlockSpec((k, cp), const),
            pl.BlockSpec((tm, cin), row),     # strided x rows (no concat!)
            pl.BlockSpec((cin, cp), const),   # 1x1 projection weight, resident
            pl.BlockSpec((tm, cp), row),
            pl.BlockSpec((tm, cp), row),
        ],
        out_specs=[pl.BlockSpec((tm, cp), row)] * 3,
        out_shape=[
            jax.ShapeDtypeStruct((mp, cp), jnp.bfloat16),
            jax.ShapeDtypeStruct((mp, cp), jnp.float32),
            jax.ShapeDtypeStruct((mp, cp), jnp.bfloat16),
        ],
        input_output_aliases={5: 1, 6: 2},
        compiler_params=_compiler_params(),
        cost_estimate=_cost(mp, k + cin, cp, 2, 3),
    )(params, patches, w, id_rows, w_id, mem, spike)


def _run_stage2_pass(params, patches, w, id_rows, mem, spike, tm):
    mp, k = patches.shape
    cp = w.shape[1]
    ntiles = mp // tm
    row = lambda i: (i, 0)
    const = lambda i: (0, 0)
    return pl.pallas_call(
        _stage2_pass_kernel,
        grid=(ntiles,),
        in_specs=[
            pl.BlockSpec(memory_space=pltpu.MemorySpace.SMEM),
            pl.BlockSpec((tm, k), row),
            pl.BlockSpec((k, cp), const),
            pl.BlockSpec((tm, cp), row),      # identity rows (bf16)
            pl.BlockSpec((tm, cp), row),
            pl.BlockSpec((tm, cp), row),
        ],
        out_specs=[pl.BlockSpec((tm, cp), row)] * 3,
        out_shape=[
            jax.ShapeDtypeStruct((mp, cp), jnp.bfloat16),
            jax.ShapeDtypeStruct((mp, cp), jnp.float32),
            jax.ShapeDtypeStruct((mp, cp), jnp.bfloat16),
        ],
        input_output_aliases={4: 1, 5: 2},
        compiler_params=_compiler_params(),
        cost_estimate=_cost(mp, k, cp, 2, 4),
    )(params, patches, w, id_rows, mem, spike)


# ---------------------------------------------------------------------------
# JAX glue (layout / im2col / parameter reshaping / padding)
# ---------------------------------------------------------------------------
def _im2col(x_nhwc, k, stride, pad):
    """x: (N,H,W,C) -> (N*Ho*Wo, k*k*C), patch order (dy, dx, c)."""
    x_pad = jnp.pad(x_nhwc, ((0, 0), (pad, pad), (pad, pad), (0, 0)))
    N, Hp, Wp, C = x_pad.shape
    Ho = (Hp - k) // stride + 1
    Wo = (Wp - k) // stride + 1
    cols = []
    for dy in range(k):
        for dx in range(k):
            cols.append(x_pad[:, dy:dy + Ho * stride:stride,
                              dx:dx + Wo * stride:stride, :])
    p = jnp.stack(cols, axis=3)                      # (N, Ho, Wo, k*k, C)
    return p.reshape(N * Ho * Wo, k * k * C)


def _pad_rows(a, mp):
    m = a.shape[0]
    return a if m == mp else jnp.pad(a, ((0, mp - m), (0, 0)))


def _nchw_to_rows(a, mp, cp, dtype):
    N, C, H, W = a.shape
    rows = jnp.transpose(a, (0, 2, 3, 1)).reshape(N * H * W, C).astype(dtype)
    return jnp.pad(rows, ((0, mp - N * H * W), (0, cp - C)))


def _weight_mat(w, cp, cout):
    """(O,I,kh,kw) -> (kh*kw*I, Cp) bf16, column order matching _im2col."""
    o, i, kh, kw = w.shape
    m = jnp.transpose(w, (2, 3, 1, 0)).reshape(kh * kw * i, o)
    return jnp.pad(m, ((0, 0), (0, cp - cout))).astype(jnp.bfloat16)


def basic_block_forward(x, w1, w2, w_id, mem_pos, mem_pos1, spike_pos, spike_pos1,
                        mask_pos, leak_pos, leak_pos1, thr_pos, thr_pos1, t, ops,
                        pos, stride, tm=None):
    """Functional equivalent of BasicBlock.forward (SNN).  All NCHW at the API."""
    N, Cin, H, W = x.shape
    Cout = w1.shape[0]
    Ho = (H + 2 - 3) // stride + 1
    Wo = (W + 2 - 3) // stride + 1
    M = N * Ho * Wo

    Cp = _round_up(Cout, LANE)                 # lane-dense channel padding
    TM = _pick_tm(M) if tm is None else tm
    ntiles = _cdiv(M, TM)
    Mp = ntiles * TM                           # whole tiles only

    # SMEM scalar params (one compiled kernel across layers / timesteps).
    t_m1 = jnp.asarray(t - 1, jnp.float32)
    params1 = jnp.stack([jnp.asarray(leak_pos, jnp.float32),
                         jnp.asarray(thr_pos, jnp.float32), t_m1])
    params2 = jnp.stack([jnp.asarray(leak_pos1, jnp.float32),
                         jnp.asarray(thr_pos1, jnp.float32), t_m1])

    x_nhwc = jnp.transpose(x, (0, 2, 3, 1))
    x_bf = x_nhwc.astype(jnp.bfloat16)         # bf16 feed for MXU + identity path

    # ops[pos] += sum(inp)  (one streaming XLA reduce over the raw input)
    ops = ops.at[pos].add(jnp.sum(x))

    # ----- stage 1: residual[0] (3x3, stride) + LIF + dropout mask -----------
    patches1 = _pad_rows(_im2col(x_bf, 3, stride, 1), Mp)          # (Mp, 9*Cin) bf16
    w1_mat = _weight_mat(w1, Cp, Cout)

    out1_p, mem1_new_p, spk1_new_p, psum = _run_stage1(
        params1, patches1, w1_mat,
        _nchw_to_rows(mem_pos, Mp, Cp, jnp.float32),
        _nchw_to_rows(spike_pos, Mp, Cp, jnp.bfloat16),
        _nchw_to_rows(mask_pos, Mp, Cp, jnp.bfloat16),
        TM)

    # ops[pos+1] += sum(out_prev)  (accumulated inside the kernel)
    ops = ops.at[pos + 1].add(psum)

    # ----- stage 2: residual[3] (3x3, stride 1) + shortcut + LIF -------------
    out1_nhwc = out1_p[:M, :Cout].reshape(N, Ho, Wo, Cout)          # bf16
    patches2 = _pad_rows(_im2col(out1_nhwc, 3, 1, 1), Mp)           # (Mp, 9*Cout) bf16
    w2_mat = _weight_mat(w2, Cp, Cout)
    mem2 = _nchw_to_rows(mem_pos1, Mp, Cp, jnp.float32)
    spk2 = _nchw_to_rows(spike_pos1, Mp, Cp, jnp.bfloat16)

    if w_id is None:
        # identity = nn.Sequential(): pure pass-through, added element-wise
        # in-kernel (no identity-matrix matmul, no eye-matrix DMA).
        id_rows = jnp.pad(x_bf.reshape(N * H * W, Cin),
                          ((0, Mp - M), (0, Cp - Cin)))
        out2_p, mem2_new_p, spk2_new_p = _run_stage2_pass(
            params2, patches2, w2_mat, id_rows, mem2, spk2, TM)
    else:
        # 1x1 strided projection shortcut as a second small matmul inside the
        # kernel (no concat -> no extra full-size HBM materialization).
        id_rows = _pad_rows(x_bf[:, ::stride, ::stride, :].reshape(M, Cin), Mp)
        w_id_mat = _weight_mat(w_id, Cp, Cout)
        out2_p, mem2_new_p, spk2_new_p = _run_stage2_proj(
            params2, patches2, w2_mat, id_rows, w_id_mat, mem2, spk2, TM)

    def to_nchw(a):
        a = a[:M, :Cout].astype(jnp.float32).reshape(N, Ho, Wo, Cout)
        return jnp.transpose(a, (0, 3, 1, 2))

    return (to_nchw(out2_p), to_nchw(mem1_new_p), to_nchw(mem2_new_p),
            to_nchw(spk1_new_p), to_nchw(spk2_new_p), ops)


# ---------------------------------------------------------------------------
# Pure-JAX reference (mirrors the PyTorch forward) for a sanity check
# ---------------------------------------------------------------------------
def _conv_ref(x_nchw, w, stride, pad):
    return jax.lax.conv_general_dilated(
        x_nchw, w, (stride, stride), [(pad, pad), (pad, pad)],
        dimension_numbers=("NCHW", "OIHW", "NCHW"))


def reference_forward(x, w1, w2, w_id, mem_p, mem_p1, spk_p, spk_p1, mask_p,
                      l_p, l_p1, th_p, th_p1, t, stride):
    delta = _conv_ref(x, w1, stride, 1)
    mem_p = l_p * mem_p + delta
    mem_thr = mem_p / th_p - 1.0
    mem_p = mem_p - th_p * (mem_thr > 0).astype(jnp.float32)
    out = (mem_thr > 0).astype(jnp.float32)
    spk_p = jnp.where(out > 0, float(t - 1), spk_p)
    out_prev = out * mask_p
    ident = x if w_id is None else _conv_ref(x, w_id, stride, 0)
    delta = _conv_ref(out_prev, w2, 1, 1) + ident
    mem_p1 = l_p1 * mem_p1 + delta
    mem_thr = mem_p1 / th_p1 - 1.0
    mem_p1 = mem_p1 - th_p1 * (mem_thr > 0).astype(jnp.float32)
    out = (mem_thr > 0).astype(jnp.float32)
    spk_p1 = jnp.where(out > 0, float(t - 1), spk_p1)
    return out, mem_p, mem_p1, spk_p, spk_p1, out_prev


# ---------------------------------------------------------------------------
if __name__ == "__main__":
    def _q(a):  # bf16-representable values so kernel (bf16 ops) matches f32 ref
        return a.astype(jnp.bfloat16).astype(jnp.float32)

    fwd = jax.jit(basic_block_forward, static_argnames=("pos", "stride", "tm"))

    def run_case(key, N, Cin, planes, H, W, stride, with_projection, tm,
                 pos=3, t=5, dropout_p=0.2):
        Ho = (H + 2 - 3) // stride + 1
        Wo = (W + 2 - 3) // stride + 1
        ks = jax.random.split(key, 8)
        w1 = _q(0.2 * jax.random.normal(ks[0], (planes, Cin, 3, 3), jnp.float32))
        w2 = _q(0.2 * jax.random.normal(ks[1], (planes, planes, 3, 3), jnp.float32))
        w_id = (_q(0.2 * jax.random.normal(ks[2], (planes, Cin, 1, 1), jnp.float32))
                if with_projection else None)
        x = _q(jax.random.normal(ks[3], (N, Cin, H, W), jnp.float32))
        mem_p = 0.1 * jax.random.normal(ks[4], (N, planes, Ho, Wo), jnp.float32)
        mem_p1 = 0.1 * jax.random.normal(ks[5], (N, planes, Ho, Wo), jnp.float32)
        spike_p = jnp.full((N, planes, Ho, Wo), -1.0, jnp.float32)
        spike_p1 = jnp.full((N, planes, Ho, Wo), -1.0, jnp.float32)
        mask_p = (jax.random.uniform(ks[6], (N, planes, Ho, Wo)) > dropout_p
                  ).astype(jnp.float32) / (1.0 - dropout_p)    # 1.25 is bf16-exact

        leak_pos, leak_pos1 = 1.0, 1.0
        thr_pos, thr_pos1 = 1.0, 0.9
        ops = jnp.zeros(pos + 2, jnp.float32)

        out, m1, m2, s1, s2, ops_new = jax.block_until_ready(
            fwd(x, w1, w2, w_id, mem_p, mem_p1, spike_p, spike_p1, mask_p,
                leak_pos, leak_pos1, thr_pos, thr_pos1, t, ops,
                pos=pos, stride=stride, tm=tm))

        r_out, r_m1, r_m2, r_s1, r_s2, r_masked = reference_forward(
            x, w1, w2, w_id, mem_p, mem_p1, spike_p, spike_p1, mask_p,
            leak_pos, leak_pos1, thr_pos, thr_pos1, t, stride)
        np.testing.assert_allclose(np.asarray(out), np.asarray(r_out), atol=1e-3)
        np.testing.assert_allclose(np.asarray(m1), np.asarray(r_m1), atol=1e-3)
        np.testing.assert_allclose(np.asarray(m2), np.asarray(r_m2), atol=1e-3)
        np.testing.assert_allclose(np.asarray(s1), np.asarray(r_s1), atol=1e-3)
        np.testing.assert_allclose(np.asarray(s2), np.asarray(r_s2), atol=1e-3)
        ops_ref = (jnp.zeros(pos + 2, jnp.float32)
                   .at[pos].add(jnp.sum(x))
                   .at[pos + 1].add(jnp.sum(r_masked)))
        np.testing.assert_allclose(np.asarray(ops_new), np.asarray(ops_ref),
                                   rtol=1e-4, atol=1e-2)

    key = jax.random.PRNGKey(0)
    k1, k2 = jax.random.split(key)
    # Projection-shortcut case (stride=2, Cin != planes); auto TM -> 2 even
    # row tiles (megacore-friendly), exercises the fused 1x1-projection dot.
    run_case(k1, N=2, Cin=4, planes=8, H=16, W=16, stride=2,
             with_projection=True, tm=None)
    # Pass-through shortcut case (stride=1, Cin == planes); tm=96 exercises a
    # 6-tile pipelined grid with row padding and the element-wise identity add.
    run_case(k2, N=2, Cin=8, planes=8, H=16, W=16, stride=1,
             with_projection=False, tm=96)

    print("KERNEL_OK")
</pallas_src>

<mosaic_0001>
module attributes {stable_mosaic.version = 11 : i64} {
  func.func @_stage1_kernel(%arg0: i32, %arg1: memref<3xf32, #tpu.memory_space<smem>>, %arg2: memref<64x36xbf16, #tpu.memory_space<vmem>>, %arg3: memref<36x128xbf16, #tpu.memory_space<vmem>>, %arg4: memref<64x128xf32, #tpu.memory_space<vmem>>, %arg5: memref<64x128xbf16, #tpu.memory_space<vmem>>, %arg6: memref<64x128xbf16, #tpu.memory_space<vmem>>, %arg7: memref<64x128xbf16, #tpu.memory_space<vmem>>, %arg8: memref<64x128xf32, #tpu.memory_space<vmem>>, %arg9: memref<64x128xbf16, #tpu.memory_space<vmem>>, %arg10: memref<8x128xf32, #tpu.memory_space<vmem>>) attributes {dimension_semantics = [#tpu.dimension_semantics<parallel>], iteration_bounds = array<i64: 2>, scalar_prefetch = 0 : i64, scratch_operands = 0 : i64, tpu.core_type = #tpu.core_type<tc>, window_params = [{transform_indices = @transform_0, window_bounds = array<i64: 3>}, {transform_indices = @transform_1, window_bounds = array<i64: 64, 36>}, {pipeline_mode = #tpu.pipeline_mode<synchronous>, transform_indices = @transform_2, window_bounds = array<i64: 36, 128>}, {transform_indices = @transform_3, window_bounds = array<i64: 64, 128>}, {transform_indices = @transform_4, window_bounds = array<i64: 64, 128>}, {transform_indices = @transform_5, window_bounds = array<i64: 64, 128>}, {transform_indices = @transform_6, window_bounds = array<i64: 64, 128>}, {transform_indices = @transform_7, window_bounds = array<i64: 64, 128>}, {transform_indices = @transform_8, window_bounds = array<i64: 64, 128>}, {transform_indices = @transform_9, window_bounds = array<i64: 8, 128>}]} {
    %c0 = arith.constant 0 : index
    %0 = memref.load %arg1[%c0] : memref<3xf32, #tpu.memory_space<smem>>
    %c1 = arith.constant 1 : index
    %1 = memref.load %arg1[%c1] : memref<3xf32, #tpu.memory_space<smem>>
    %c2 = arith.constant 2 : index
    %2 = memref.load %arg1[%c2] : memref<3xf32, #tpu.memory_space<smem>>
    %c0_0 = arith.constant 0 : index
    %c0_1 = arith.constant 0 : index
    %3 = vector.load %arg2[%c0_0, %c0_1] : memref<64x36xbf16, #tpu.memory_space<vmem>>, vector<64x36xbf16>
    %c0_2 = arith.constant 0 : index
    %c0_3 = arith.constant 0 : index
    %4 = vector.load %arg3[%c0_2, %c0_3] : memref<36x128xbf16, #tpu.memory_space<vmem>>, vector<36x128xbf16>
    %cst = arith.constant dense<0.000000e+00> : vector<64x128xf32>
    %5 = tpu.matmul %3, %4, %cst {dimension_numbers = #tpu.dot_dimension_numbers<[1], [0], [0], [1], [0, 0, 1, 1], [], []>} : vector<64x36xbf16>, vector<36x128xbf16>, vector<64x128xf32> -> vector<64x128xf32>
    %c0_4 = arith.constant 0 : index
    %c0_5 = arith.constant 0 : index
    %6 = vector.load %arg4[%c0_4, %c0_5] : memref<64x128xf32, #tpu.memory_space<vmem>>, vector<64x128xf32>
    %7 = vector.broadcast %0 : f32 to vector<64x128xf32>
    %8 = arith.mulf %7, %6 : vector<64x128xf32>
    %9 = arith.addf %8, %5 : vector<64x128xf32>
    %10 = vector.broadcast %1 : f32 to vector<64x128xf32>
    %11 = arith.cmpf ogt, %9, %10 : vector<64x128xf32>
    %12 = arith.extui %11 : vector<64x128xi1> to vector<64x128xi32>
    %13 = arith.sitofp %12 : vector<64x128xi32> to vector<64x128xf32>
    %14 = vector.broadcast %1 : f32 to vector<64x128xf32>
    %15 = arith.mulf %14, %13 : vector<64x128xf32>
    %16 = arith.subf %9, %15 : vector<64x128xf32>
    %c0_6 = arith.constant 0 : index
    %c0_7 = arith.constant 0 : index
    %17 = vector.load %arg8[%c0_6, %c0_7] : memref<64x128xf32, #tpu.memory_space<vmem>>, vector<64x128xf32>
    tpu.vector_store %arg8[%c0_6, %c0_7], %16 {strides = array<i32>} : memref<64x128xf32, #tpu.memory_space<vmem>>, vector<64x128xf32>,
    %c0_8 = arith.constant 0 : index
    %c0_9 = arith.constant 0 : index
    %18 = vector.load %arg5[%c0_8, %c0_9] : memref<64x128xbf16, #tpu.memory_space<vmem>>, vector<64x128xbf16>
    %19 = arith.extf %18 : vector<64x128xbf16> to vector<64x128xf32>
    %20 = vector.broadcast %2 : f32 to vector<64x128xf32>
    %21 = arith.select %11, %20, %19 : vector<64x128xi1>, vector<64x128xf32>
    %22 = arith.truncf %21 : vector<64x128xf32> to vector<64x128xbf16>
    %c0_10 = arith.constant 0 : index
    %c0_11 = arith.constant 0 : index
    %23 = vector.load %arg9[%c0_10, %c0_11] : memref<64x128xbf16, #tpu.memory_space<vmem>>, vector<64x128xbf16>
    tpu.vector_store %arg9[%c0_10, %c0_11], %22 {strides = array<i32>} : memref<64x128xbf16, #tpu.memory_space<vmem>>, vector<64x128xbf16>,
    %c0_12 = arith.constant 0 : index
    %c0_13 = arith.constant 0 : index
    %24 = vector.load %arg6[%c0_12, %c0_13] : memref<64x128xbf16, #tpu.memory_space<vmem>>, vector<64x128xbf16>
    %25 = arith.extf %24 : vector<64x128xbf16> to vector<64x128xf32>
    %26 = arith.mulf %13, %25 : vector<64x128xf32>
    %27 = arith.truncf %26 : vector<64x128xf32> to vector<64x128xbf16>
    %c0_14 = arith.constant 0 : index
    %c0_15 = arith.constant 0 : index
    %28 = vector.load %arg7[%c0_14, %c0_15] : memref<64x128xbf16, #tpu.memory_space<vmem>>, vector<64x128xbf16>
    tpu.vector_store %arg7[%c0_14, %c0_15], %27 {strides = array<i32>} : memref<64x128xbf16, #tpu.memory_space<vmem>>, vector<64x128xbf16>,
    %cst_16 = arith.constant dense<0.000000e+00> : vector<128xf32>
    %29 = vector.multi_reduction <add>, %26, %cst_16 [0] : vector<64x128xf32> to vector<128xf32>
    %30 = vector.shape_cast %29 : vector<128xf32> to vector<1x128xf32>
    %31 = vector.shape_cast %30 : vector<1x128xf32> to vector<1x128xf32>
    %32 = vector.broadcast %31 : vector<1x128xf32> to vector<8x128xf32>
    %c0_17 = arith.constant 0 : index
    %c0_18 = arith.constant 0 : index
    %33 = vector.load %arg10[%c0_17, %c0_18] : memref<8x128xf32, #tpu.memory_space<vmem>>, vector<8x128xf32>
    tpu.vector_store %arg10[%c0_17, %c0_18], %32 {strides = array<i32>} : memref<8x128xf32, #tpu.memory_space<vmem>>, vector<8x128xf32>,
    return
  }
  func.func @transform_0(%arg0: i32) -> i32 {
    %c0_i32 = arith.constant 0 : i32
    %c0_i32_0 = arith.constant 0 : i32
    return %c0_i32 : i32
  }
  func.func @transform_1(%arg0: i32) -> (i32, i32) {
    %c0_i32 = arith.constant 0 : i32
    %c0_i32_0 = arith.constant 0 : i32
    return %arg0, %c0_i32 : i32, i32
  }
  func.func @transform_2(%arg0: i32) -> (i32, i32) {
    %c0_i32 = arith.constant 0 : i32
    %c0_i32_0 = arith.constant 0 : i32
    %c0_i32_1 = arith.constant 0 : i32
    return %c0_i32, %c0_i32_0 : i32, i32
  }
  func.func @transform_3(%arg0: i32) -> (i32, i32) {
    %c0_i32 = arith.constant 0 : i32
    %c0_i32_0 = arith.constant 0 : i32
    return %arg0, %c0_i32 : i32, i32
  }
  func.func @transform_4(%arg0: i32) -> (i32, i32) {
    %c0_i32 = arith.constant 0 : i32
    %c0_i32_0 = arith.constant 0 : i32
    return %arg0, %c0_i32 : i32, i32
  }
  func.func @transform_5(%arg0: i32) -> (i32, i32) {
    %c0_i32 = arith.constant 0 : i32
    %c0_i32_0 = arith.constant 0 : i32
    return %arg0, %c0_i32 : i32, i32
  }
  func.func @transform_6(%arg0: i32) -> (i32, i32) {
    %c0_i32 = arith.constant 0 : i32
    %c0_i32_0 = arith.constant 0 : i32
    return %arg0, %c0_i32 : i32, i32
  }
  func.func @transform_7(%arg0: i32) -> (i32, i32) {
    %c0_i32 = arith.constant 0 : i32
    %c0_i32_0 = arith.constant 0 : i32
    return %arg0, %c0_i32 : i32, i32
  }
  func.func @transform_8(%arg0: i32) -> (i32, i32) {
    %c0_i32 = arith.constant 0 : i32
    %c0_i32_0 = arith.constant 0 : i32
    return %arg0, %c0_i32 : i32, i32
  }
  func.func @transform_9(%arg0: i32) -> (i32, i32) {
    %c0_i32 = arith.constant 0 : i32
    %c0_i32_0 = arith.constant 0 : i32
    return %arg0, %c0_i32 : i32, i32
  }
}

module attributes {stable_mosaic.version = 11 : i64} {
  func.func @_stage2_proj_kernel(%arg0: i32, %arg1: memref<3xf32, #tpu.memory_space<smem>>, %arg2: memref<64x72xbf16, #tpu.memory_space<vmem>>, %arg3: memref<72x128xbf16, #tpu.memory_space<vmem>>, %arg4: memref<64x4xbf16, #tpu.memory_space<vmem>>, %arg5: memref<4x128xbf16, #tpu.memory_space<vmem>>, %arg6: memref<64x128xf32, #tpu.memory_space<vmem>>, %arg7: memref<64x128xbf16, #tpu.memory_space<vmem>>, %arg8: memref<64x128xbf16, #tpu.memory_space<vmem>>, %arg9: memref<64x128xf32, #tpu.memory_space<vmem>>, %arg10: memref<64x128xbf16, #tpu.memory_space<vmem>>) attributes {dimension_semantics = [#tpu.dimension_semantics<parallel>], iteration_bounds = array<i64: 2>, scalar_prefetch = 0 : i64, scratch_operands = 0 : i64, tpu.core_type = #tpu.core_type<tc>, window_params = [{transform_indices = @transform_0, window_bounds = array<i64: 3>}, {transform_indices = @transform_1, window_bounds = array<i64: 64, 72>}, {pipeline_mode = #tpu.pipeline_mode<synchronous>, transform_indices = @transform_2, window_bounds = array<i64: 72, 128>}, {transform_indices = @transform_3, window_bounds = array<i64: 64, 4>}, {pipeline_mode = #tpu.pipeline_mode<synchronous>, transform_indices = @transform_4, window_bounds = array<i64: 4, 128>}, {transform_indices = @transform_5, window_bounds = array<i64: 64, 128>}, {transform_indices = @transform_6, window_bounds = array<i64: 64, 128>}, {transform_indices = @transform_7, window_bounds = array<i64: 64, 128>}, {transform_indices = @transform_8, window_bounds = array<i64: 64, 128>}, {transform_indices = @transform_9, window_bounds = array<i64: 64, 128>}]} {
    %c0 = arith.constant 0 : index
    %0 = memref.load %arg1[%c0] : memref<3xf32, #tpu.memory_space<smem>>
    %c1 = arith.constant 1 : index
    %1 = memref.load %arg1[%c1] : memref<3xf32, #tpu.memory_space<smem>>
    %c2 = arith.constant 2 : index
    %2 = memref.load %arg1[%c2] : memref<3xf32, #tpu.memory_space<smem>>
    %c0_0 = arith.constant 0 : index
    %c0_1 = arith.constant 0 : index
    %3 = vector.load %arg2[%c0_0, %c0_1] : memref<64x72xbf16, #tpu.memory_space<vmem>>, vector<64x72xbf16>
    %c0_2 = arith.constant 0 : index
    %c0_3 = arith.constant 0 : index
    %4 = vector.load %arg3[%c0_2, %c0_3] : memref<72x128xbf16, #tpu.memory_space<vmem>>, vector<72x128xbf16>
    %cst = arith.constant dense<0.000000e+00> : vector<64x128xf32>
    %5 = tpu.matmul %3, %4, %cst {dimension_numbers = #tpu.dot_dimension_numbers<[1], [0], [0], [1], [0, 0, 1, 1], [], []>} : vector<64x72xbf16>, vector<72x128xbf16>, vector<64x128xf32> -> vector<64x128xf32>
    %c0_4 = arith.constant 0 : index
    %c0_5 = arith.constant 0 : index
    %6 = vector.load %arg4[%c0_4, %c0_5] : memref<64x4xbf16, #tpu.memory_space<vmem>>, vector<64x4xbf16>
    %c0_6 = arith.constant 0 : index
    %c0_7 = arith.constant 0 : index
    %7 = vector.load %arg5[%c0_6, %c0_7] : memref<4x128xbf16, #tpu.memory_space<vmem>>, vector<4x128xbf16>
    %cst_8 = arith.constant dense<0.000000e+00> : vector<64x128xf32>
    %8 = tpu.matmul %6, %7, %cst_8 {dimension_numbers = #tpu.dot_dimension_numbers<[1], [0], [0], [1], [0, 0, 1, 1], [], []>} : vector<64x4xbf16>, vector<4x128xbf16>, vector<64x128xf32> -> vector<64x128xf32>
    %9 = arith.addf %5, %8 : vector<64x128xf32>
    %c0_9 = arith.constant 0 : index
    %c0_10 = arith.constant 0 : index
    %10 = vector.load %arg6[%c0_9, %c0_10] : memref<64x128xf32, #tpu.memory_space<vmem>>, vector<64x128xf32>
    %11 = vector.broadcast %0 : f32 to vector<64x128xf32>
    %12 = arith.mulf %11, %10 : vector<64x128xf32>
    %13 = arith.addf %12, %9 : vector<64x128xf32>
    %14 = vector.broadcast %1 : f32 to vector<64x128xf32>
    %15 = arith.cmpf ogt, %13, %14 : vector<64x128xf32>
    %16 = arith.extui %15 : vector<64x128xi1> to vector<64x128xi32>
    %17 = arith.sitofp %16 : vector<64x128xi32> to vector<64x128xf32>
    %18 = vector.broadcast %1 : f32 to vector<64x128xf32>
    %19 = arith.mulf %18, %17 : vector<64x128xf32>
    %20 = arith.subf %13, %19 : vector<64x128xf32>
    %c0_11 = arith.constant 0 : index
    %c0_12 = arith.constant 0 : index
    %21 = vector.load %arg9[%c0_11, %c0_12] : memref<64x128xf32, #tpu.memory_space<vmem>>, vector<64x128xf32>
    tpu.vector_store %arg9[%c0_11, %c0_12], %20 {strides = array<i32>} : memref<64x128xf32, #tpu.memory_space<vmem>>, vector<64x128xf32>,
    %c0_13 = arith.constant 0 : index
    %c0_14 = arith.constant 0 : index
    %22 = vector.load %arg7[%c0_13, %c0_14] : memref<64x128xbf16, #tpu.memory_space<vmem>>, vector<64x128xbf16>
    %23 = arith.extf %22 : vector<64x128xbf16> to vector<64x128xf32>
    %24 = vector.broadcast %2 : f32 to vector<64x128xf32>
    %25 = arith.select %15, %24, %23 : vector<64x128xi1>, vector<64x128xf32>
    %26 = arith.truncf %25 : vector<64x128xf32> to vector<64x128xbf16>
    %c0_15 = arith.constant 0 : index
    %c0_16 = arith.constant 0 : index
    %27 = vector.load %arg10[%c0_15, %c0_16] : memref<64x128xbf16, #tpu.memory_space<vmem>>, vector<64x128xbf16>
    tpu.vector_store %arg10[%c0_15, %c0_16], %26 {strides = array<i32>} : memref<64x128xbf16, #tpu.memory_space<vmem>>, vector<64x128xbf16>,
    %28 = arith.truncf %17 : vector<64x128xf32> to vector<64x128xbf16>
    %c0_17 = arith.constant 0 : index
    %c0_18 = arith.constant 0 : index
    %29 = vector.load %arg8[%c0_17, %c0_18] : memref<64x128xbf16, #tpu.memory_space<vmem>>, vector<64x128xbf16>
    tpu.vector_store %arg8[%c0_17, %c0_18], %28 {strides = array<i32>} : memref<64x128xbf16, #tpu.memory_space<vmem>>, vector<64x128xbf16>,
    return
  }
  func.func @transform_0(%arg0: i32) -> i32 {
    %c0_i32 = arith.constant 0 : i32
    %c0_i32_0 = arith.constant 0 : i32
    return %c0_i32 : i32
  }
  func.func @transform_1(%arg0: i32) -> (i32, i32) {
    %c0_i32 = arith.constant 0 : i32
    %c0_i32_0 = arith.constant 0 : i32
    return %arg0, %c0_i32 : i32, i32
  }
  func.func @transform_2(%arg0: i32) -> (i32, i32) {
    %c0_i32 = arith.constant 0 : i32
    %c0_i32_0 = arith.constant 0 : i32
    %c0_i32_1 = arith.constant 0 : i32
    return %c0_i32, %c0_i32_0 : i32, i32
  }
  func.func @transform_3(%arg0: i32) -> (i32, i32) {
    %c0_i32 = arith.constant 0 : i32
    %c0_i32_0 = arith.constant 0 : i32
    return %arg0, %c0_i32 : i32, i32
  }
  func.func @transform_4(%arg0: i32) -> (i32, i32) {
    %c0_i32 = arith.constant 0 : i32
    %c0_i32_0 = arith.constant 0 : i32
    %c0_i32_1 = arith.constant 0 : i32
    return %c0_i32, %c0_i32_0 : i32, i32
  }
  func.func @transform_5(%arg0: i32) -> (i32, i32) {
    %c0_i32 = arith.constant 0 : i32
    %c0_i32_0 = arith.constant 0 : i32
    return %arg0, %c0_i32 : i32, i32
  }
  func.func @transform_6(%arg0: i32) -> (i32, i32) {
    %c0_i32 = arith.constant 0 : i32
    %c0_i32_0 = arith.constant 0 : i32
    return %arg0, %c0_i32 : i32, i32
  }
  func.func @transform_7(%arg0: i32) -> (i32, i32) {
    %c0_i32 = arith.constant 0 : i32
    %c0_i32_0 = arith.constant 0 : i32
    return %arg0, %c0_i32 : i32, i32
  }
  func.func @transform_8(%arg0: i32) -> (i32, i32) {
    %c0_i32 = arith.constant 0 : i32
    %c0_i32_0 = arith.constant 0 : i32
    return %arg0, %c0_i32 : i32, i32
  }
  func.func @transform_9(%arg0: i32) -> (i32, i32) {
    %c0_i32 = arith.constant 0 : i32
    %c0_i32_0 = arith.constant 0 : i32
    return %arg0, %c0_i32 : i32, i32
  }
}

</mosaic_0001>

<llo_original>
// kernel: basic_block_forward.2
$region0: #{basic_block_forward.2}
  #allocation0 [shape = 'u32[]', space=smem, size = 0x4, offset = 0x4, fixed_abs, tag = 'smem constant byte address 0x4 - core index']
  #allocation1 [shape = 'u32[144,128]{1,0:T(1,128)}', space=vmem, size = 0x12000, scoped, tag = 'internal scratch']
  %s0 = inlined_call_operand.vmem [shape: f32[3], index: 0, kind: input, shape index: {}]
  %s1 = inlined_call_operand.vmem [shape: bf16[128,36], index: 1, kind: input, shape index: {}]
  %s2 = inlined_call_operand.vmem [shape: bf16[36,128], index: 2, kind: input, shape index: {}]
  %s3 = inlined_call_operand.vmem [shape: f32[128,128], index: 3, kind: input, shape index: {}, may-alias: {3,7}]
  %s4 = inlined_call_operand.vmem [shape: bf16[128,128], index: 4, kind: input, shape index: {}, may-alias: {4,8}]
  %s5 = inlined_call_operand.vmem [shape: bf16[128,128], index: 5, kind: input, shape index: {}]
  %s6 = inlined_call_operand.vmem [shape: bf16[128,128], index: 6, kind: output, shape index: {0}]
  %s7 = inlined_call_operand.vmem [shape: f32[128,128], index: 7, kind: output, shape index: {1}, may-alias: {3,7}]
  %s8 = inlined_call_operand.vmem [shape: bf16[128,128], index: 8, kind: output, shape index: {2}, may-alias: {4,8}]
  %s9 = inlined_call_operand.vmem [shape: f32[16,128], index: 9, kind: output, shape index: {3}]
  %10 = xla_tuple %s6, %s7, %s8, %s9
  %s11 = sld [smem:[#allocation0]]
  $region85: #{basic_block_forward.2} parent=0
    _
  %s13 = ssub.s32 1, %s11
  %s14 = scalar_select 0, %s13, %s11
  $region1: #{basic_block_forward.2} parent=0
    #allocation2 [shape = 'u8[512]{0}', space=smem, size = 0x200, scoped, tag = 'input window, operand 0, single buffered']
    #allocation3 [shape = 's32[2]{0}', space=sflag, size = 0x8, scoped, tag = 'scoped memory for basic_block_forward.2']
    %15 = vsyncpa [#allocation3], 0
    loop: start=0, step=1, limit=4
    $region2: #{basic_block_forward.2} parent=1 // loop_pre_header
      _
    $region3: #{basic_block_forward.2} parent=1 // loop_header
      %s17 = sphi 0, %s21
      %p18 = scmp.ge.s32.totalorder %s17, 4
      %s25 = sphi 0, %s25
      %s27 = sphi 0, %s25
      %s28 = sphi 0, %s27
      %s42 = sphi 0, %s28
      %s48 = sphi 0, %s50
      %s51 = sphi 0, %s48
      %s52 = sphi 0, %s51
      %s68 = sphi 0, %s52
      %s72 = sphi 0, %s72
      %s74 = sphi 0, %s72
      %s75 = sphi 0, %s74
      %s89 = sphi 0, %s75
      %s95 = sphi 0, %s97
      %s98 = sphi 0, %s95
      %s99 = sphi 0, %s98
      %s115 = sphi 0, %s99
      %s121 = sphi 0, %s123
      %s124 = sphi 0, %s121
      %s125 = sphi 0, %s124
      %s141 = sphi 0, %s125
      %s147 = sphi 0, %s149
      %s150 = sphi 0, %s147
      %s151 = sphi 0, %s150
      %s167 = sphi 0, %s151
      %s173 = sphi 0, %s175
      %s176 = sphi 0, %s173
      %s177 = sphi 0, %s176
      %s193 = sphi 0, %s177
      %s199 = sphi 0, %s201
      %s202 = sphi 0, %s199
      %s203 = sphi 0, %s202
      %s219 = sphi 0, %s203
      %s225 = sphi 0, %s227
      %s228 = sphi 0, %s225
      %s229 = sphi 0, %s228
      %s245 = sphi 0, %s229
      %s251 = sphi 0, %s253
      %s254 = sphi 0, %s251
      %s255 = sphi 0, %s254
      %s271 = sphi 0, %s255
    $region4: #{basic_block_forward.2} parent=1 // loop_header_branch
      %20 = sbr.rel (%p18) target = $region8
    $region5: #{basic_block_forward.2} parent=1 // loop_body
      %s22 = ssub.s32 %s17, 1
      %s23 = ssub.s32 %s17, 2
      %s24 = sadd.s32 %s17, 1
      %s26 = sadd.s32 %s25, 1
      %p29 = scmp.eq.s32.totalorder %s17, 1
      %p30 = scmp.ne.s32.totalorder %s25, %s27
      %p31 = scmp.eq.s32.totalorder %s17, 0
      %p32 = por %p30, %p31
      %p33 = scmp.ne.s32.totalorder %s25, %s27
      %p34 = scmp.eq.s32.totalorder %s22, 1
      %p35 = por %p33, %p34
      %p36 = scmp.ne.s32.totalorder %s27, %s28
      %p37 = scmp.eq.s32.totalorder %s22, 0
      %p38 = por %p36, %p37
      %p39 = scmp.ne.s32.totalorder %s27, %s28
      %p40 = scmp.eq.s32.totalorder %s23, 1
      %p41 = por %p39, %p40
      %p43 = scmp.ne.s32.totalorder %s28, %s42
      %p44 = scmp.eq.s32.totalorder %s23, 0
      %p45 = por %p43, %p44
      %s46 = ssub.s32 %s17, %s24
      %p47 = scmp.eq.s32.totalorder %s46, 0
      %s49 = sadd.s32 %s48, 1
      %s50 = scalar_select %p47, %s48, %s49
      %p53 = pneg %p47
      %p54 = scmp.eq.s32.totalorder %s17, 1
      %p55 = por %p53, %p54
      %p56 = scmp.ne.s32.totalorder %s48, %s51
      %p57 = scmp.eq.s32.totalorder %s17, 0
      %p58 = por %p56, %p57
      %p59 = scmp.ne.s32.totalorder %s48, %s51
      %p60 = scmp.eq.s32.totalorder %s22, 1
      %p61 = por %p59, %p60
      %p62 = scmp.ne.s32.totalorder %s51, %s52
      %p63 = scmp.eq.s32.totalorder %s22, 0
      %p64 = por %p62, %p63
      %p65 = scmp.ne.s32.totalorder %s51, %s52
      %p66 = scmp.eq.s32.totalorder %s23, 1
      %p67 = por %p65, %p66
      %p69 = scmp.ne.s32.totalorder %s52, %s68
      %p70 = scmp.eq.s32.totalorder %s23, 0
      %p71 = por %p69, %p70
      %s73 = sadd.s32 %s72, 1
      %p76 = scmp.eq.s32.totalorder %s17, 1
      %p77 = scmp.ne.s32.totalorder %s72, %s74
      %p78 = scmp.eq.s32.totalorder %s17, 0
      %p79 = por %p77, %p78
      %p80 = scmp.ne.s32.totalorder %s72, %s74
      %p81 = scmp.eq.s32.totalorder %s22, 1
      %p82 = por %p80, %p81
      %p83 = scmp.ne.s32.totalorder %s74, %s75
      %p84 = scmp.eq.s32.totalorder %s22, 0
      %p85 = por %p83, %p84
      %p86 = scmp.ne.s32.totalorder %s74, %s75
      %p87 = scmp.eq.s32.totalorder %s23, 1
      %p88 = por %p86, %p87
      %p90 = scmp.ne.s32.totalorder %s75, %s89
      %p91 = scmp.eq.s32.totalorder %s23, 0
      %p92 = por %p90, %p91
      %s93 = ssub.s32 %s17, %s24
      %p94 = scmp.eq.s32.totalorder %s93, 0
      %s96 = sadd.s32 %s95, 1
      %s97 = scalar_select %p94, %s95, %s96
      %p100 = pneg %p94
      %p101 = scmp.eq.s32.totalorder %s17, 1
      %p102 = por %p100, %p101
      %p103 = scmp.ne.s32.totalorder %s95, %s98
      %p104 = scmp.eq.s32.totalorder %s17, 0
      %p105 = por %p103, %p104
      %p106 = scmp.ne.s32.totalorder %s95, %s98
      %p107 = scmp.eq.s32.totalorder %s22, 1
      %p108 = por %p106, %p107
      %p109 = scmp.ne.s32.totalorder %s98, %s99
      %p110 = scmp.eq.s32.totalorder %s22, 0
      %p111 = por %p109, %p110
      %p112 = scmp.ne.s32.totalorder %s98, %s99
      %p113 = scmp.eq.s32.totalorder %s23, 1
      %p114 = por %p112, %p113
      %p116 = scmp.ne.s32.totalorder %s99, %s115
      %p117 = scmp.eq.s32.totalorder %s23, 0
      %p118 = por %p116, %p117
      %s119 = ssub.s32 %s17, %s24
      %p120 = scmp.eq.s32.totalorder %s119, 0
      %s122 = sadd.s32 %s121, 1
      %s123 = scalar_select %p120, %s121, %s122
      %p126 = pneg %p120
      %p127 = scmp.eq.s32.totalorder %s17, 1
      %p128 = por %p126, %p127
      %p129 = scmp.ne.s32.totalorder %s121, %s124
      %p130 = scmp.eq.s32.totalorder %s17, 0
      %p131 = por %p129, %p130
      %p132 = scmp.ne.s32.totalorder %s121, %s124
      %p133 = scmp.eq.s32.totalorder %s22, 1
      %p134 = por %p132, %p133
      %p135 = scmp.ne.s32.totalorder %s124, %s125
      %p136 = scmp.eq.s32.totalorder %s22, 0
      %p137 = por %p135, %p136
      %p138 = scmp.ne.s32.totalorder %s124, %s125
      %p139 = scmp.eq.s32.totalorder %s23, 1
      %p140 = por %p138, %p139
      %p142 = scmp.ne.s32.totalorder %s125, %s141
      %p143 = scmp.eq.s32.totalorder %s23, 0
      %p144 = por %p142, %p143
      %s145 = ssub.s32 %s17, %s24
      %p146 = scmp.eq.s32.totalorder %s145, 0
      %s148 = sadd.s32 %s147, 1
      %s149 = scalar_select %p146, %s147, %s148
      %p152 = pneg %p146
      %p153 = scmp.eq.s32.totalorder %s17, 1
      %p154 = por %p152, %p153
      %p155 = scmp.ne.s32.totalorder %s147, %s150
      %p156 = scmp.eq.s32.totalorder %s17, 0
      %p157 = por %p155, %p156
      %p158 = scmp.ne.s32.totalorder %s147, %s150
      %p159 = scmp.eq.s32.totalorder %s22, 1
      %p160 = por %p158, %p159
      %p161 = scmp.ne.s32.totalorder %s150, %s151
      %p162 = scmp.eq.s32.totalorder %s22, 0
      %p163 = por %p161, %p162
      %p164 = scmp.ne.s32.totalorder %s150, %s151
      %p165 = scmp.eq.s32.totalorder %s23, 1
      %p166 = por %p164, %p165
      %p168 = scmp.ne.s32.totalorder %s151, %s167
      %p169 = scmp.eq.s32.totalorder %s23, 0
      %p170 = por %p168, %p169
      %s171 = ssub.s32 %s17, %s24
      %p172 = scmp.eq.s32.totalorder %s171, 0
      %s174 = sadd.s32 %s173, 1
      %s175 = scalar_select %p172, %s173, %s174
      %p178 = pneg %p172
      %p179 = scmp.eq.s32.totalorder %s17, 1
      %p180 = por %p178, %p179
      %p181 = scmp.ne.s32.totalorder %s173, %s176
      %p182 = scmp.eq.s32.totalorder %s17, 0
      %p183 = por %p181, %p182
      %p184 = scmp.ne.s32.totalorder %s173, %s176
      %p185 = scmp.eq.s32.totalorder %s22, 1
      %p186 = por %p184, %p185
      %p187 = scmp.ne.s32.totalorder %s176, %s177
      %p188 = scmp.eq.s32.totalorder %s22, 0
      %p189 = por %p187, %p188
      %p190 = scmp.ne.s32.totalorder %s176, %s177
      %p191 = scmp.eq.s32.totalorder %s23, 1
      %p192 = por %p190, %p191
      %p194 = scmp.ne.s32.totalorder %s177, %s193
      %p195 = scmp.eq.s32.totalorder %s23, 0
      %p196 = por %p194, %p195
      %s197 = ssub.s32 %s17, %s24
      %p198 = scmp.eq.s32.totalorder %s197, 0
      %s200 = sadd.s32 %s199, 1
      %s201 = scalar_select %p198, %s199, %s200
      %p204 = pneg %p198
      %p205 = scmp.eq.s32.totalorder %s17, 1
      %p206 = por %p204, %p205
      %p207 = scmp.ne.s32.totalorder %s199, %s202
      %p208 = scmp.eq.s32.totalorder %s17, 0
      %p209 = por %p207, %p208
      %p210 = scmp.ne.s32.totalorder %s199, %s202
      %p211 = scmp.eq.s32.totalorder %s22, 1
      %p212 = por %p210, %p211
      %p213 = scmp.ne.s32.totalorder %s202, %s203
      %p214 = scmp.eq.s32.totalorder %s22, 0
      %p215 = por %p213, %p214
      %p216 = scmp.ne.s32.totalorder %s202, %s203
      %p217 = scmp.eq.s32.totalorder %s23, 1
      %p218 = por %p216, %p217
      %p220 = scmp.ne.s32.totalorder %s203, %s219
      %p221 = scmp.eq.s32.totalorder %s23, 0
      %p222 = por %p220, %p221
      %s223 = ssub.s32 %s17, %s24
      %p224 = scmp.eq.s32.totalorder %s223, 0
      %s226 = sadd.s32 %s225, 1
      %s227 = scalar_select %p224, %s225, %s226
      %p230 = pneg %p224
      %p231 = scmp.eq.s32.totalorder %s17, 1
      %p232 = por %p230, %p231
      %p233 = scmp.ne.s32.totalorder %s225, %s228
      %p234 = scmp.eq.s32.totalorder %s17, 0
      %p235 = por %p233, %p234
      %p236 = scmp.ne.s32.totalorder %s225, %s228
      %p237 = scmp.eq.s32.totalorder %s22, 1
      %p238 = por %p236, %p237
      %p239 = scmp.ne.s32.totalorder %s228, %s229
      %p240 = scmp.eq.s32.totalorder %s22, 0
      %p241 = por %p239, %p240
      %p242 = scmp.ne.s32.totalorder %s228, %s229
      %p243 = scmp.eq.s32.totalorder %s23, 1
      %p244 = por %p242, %p243
      %p246 = scmp.ne.s32.totalorder %s229, %s245
      %p247 = scmp.eq.s32.totalorder %s23, 0
      %p248 = por %p246, %p247
      %s249 = ssub.s32 %s17, %s24
      %p250 = scmp.eq.s32.totalorder %s249, 0
      %s252 = sadd.s32 %s251, 1
      %s253 = scalar_select %p250, %s251, %s252
      %p256 = pneg %p250
      %p257 = scmp.eq.s32.totalorder %s17, 1
      %p258 = por %p256, %p257
      %p259 = scmp.ne.s32.totalorder %s251, %s254
      %p260 = scmp.eq.s32.totalorder %s17, 0
      %p261 = por %p259, %p260
      %p262 = scmp.ne.s32.totalorder %s251, %s254
      %p263 = scmp.eq.s32.totalorder %s22, 1
      %p264 = por %p262, %p263
      %p265 = scmp.ne.s32.totalorder %s254, %s255
      %p266 = scmp.eq.s32.totalorder %s22, 0
      %p267 = por %p265, %p266
      %p268 = scmp.ne.s32.totalorder %s254, %s255
      %p269 = scmp.eq.s32.totalorder %s23, 1
      %p270 = por %p268, %p269
      %p272 = scmp.ne.s32.totalorder %s255, %s271
      %p273 = scmp.eq.s32.totalorder %s23, 0
      %p274 = por %p272, %p273
      %p275 = scmp.le.s32.totalorder 1, %s17
      %p276 = scmp.lt.s32.totalorder %s17, 3
      %p277 = pnand %p275, %p276
      %p278 = pneg %p277
      // Predicated region
      $region9: #{basic_block_forward.2} parent=5 // pred_check
        _
      $region10: #{basic_block_forward.2} parent=5 // pred_check_branch
        %280 = sbr.rel (%p277) target = $region12
      $region11: #{basic_block_forward.2} parent=5 // pred_region
        %s281 = ssub.s32 %s17, 1
        // Predicated region
        $region13: #{basic_block_forward.2} parent=11 // pred_check
          %p282 = pneg %p38
        $region14: #{basic_block_forward.2} parent=11 // pred_check_branch
          %284 = sbr.rel (%p282) target = $region16
        $region15: #{basic_block_forward.2} parent=11 // pred_region
          %s286 = ssub.s32 16, 16
          %287 = vsyncadd [#allocation3], %s286
          %s289 = sshll.u32 %s0, 4
          %s290 = int_to_ptr.vmem [resolvable:$true] %s289
          %292 = dma.vmem_to_smem %s290, 16, [#allocation2], [#allocation3]
        $region16: #{basic_block_forward.2} parent=11 // pred_fallthru
          _
        // Predicated region
        $region17: #{basic_block_forward.2} parent=11 // pred_check
          %p293 = pneg %p85
        $region18: #{basic_block_forward.2} parent=11 // pred_check_branch
          %295 = sbr.rel (%p293) target = $region20
        $region19: #{basic_block_forward.2} parent=11 // pred_region
          _
        $region20: #{basic_block_forward.2} parent=11 // pred_fallthru
          _
      $region12: #{basic_block_forward.2} parent=5 // pred_fallthru
        _
      %p296 = scmp.lt.s32.totalorder %s17, 2
      // Predicated region
      $region21: #{basic_block_forward.2} parent=5 // pred_check
        %p297 = pneg %p296
      $region22: #{basic_block_forward.2} parent=5 // pred_check_branch
        %299 = sbr.rel (%p297) target = $region24
      $region23: #{basic_block_forward.2} parent=5 // pred_region
        // Predicated region
        $region25: #{basic_block_forward.2} parent=23 // pred_check
          %p300 = pneg %p58
        $region26: #{basic_block_forward.2} parent=23 // pred_check_branch
          %302 = sbr.rel (%p300) target = $region28
        $region27: #{basic_block_forward.2} parent=23 // pred_region
          %s303 = smul.u32 8, %s17
          %p304 = scmp.lt.s32.totalorder %s303, 15
          %s305 = scalar_select %p304, %s303, 15
          %s306 = smul.addr %s305, 4
          %s307 = scalar_lea.vmem %s1, %s306
          %s308 = smul.u32 8, %s17
        $region28: #{basic_block_forward.2} parent=23 // pred_fallthru
          _
        // Predicated region
        $region29: #{basic_block_forward.2} parent=23 // pred_check
          %p309 = pneg %p105
        $region30: #{basic_block_forward.2} parent=23 // pred_check_branch
          %311 = sbr.rel (%p309) target = $region32
        $region31: #{basic_block_forward.2} parent=23 // pred_region
          %s312 = smul.u32 8, %s17
          %p313 = scmp.lt.s32.totalorder %s312, 15
          %s314 = scalar_select %p313, %s312, 15
          %s315 = smul.addr %s314, 8
          %s316 = scalar_lea.vmem %s3, %s315
          %s317 = smul.u32 8, %s17
        $region32: #{basic_block_forward.2} parent=23 // pred_fallthru
          _
        // Predicated region
        $region33: #{basic_block_forward.2} parent=23 // pred_check
          %p318 = pneg %p131
        $region34: #{basic_block_forward.2} parent=23 // pred_check_branch
          %320 = sbr.rel (%p318) target = $region36
        $region35: #{basic_block_forward.2} parent=23 // pred_region
          %s321 = smul.u32 8, %s17
          %p322 = scmp.lt.s32.totalorder %s321, 15
          %s323 = scalar_select %p322, %s321, 15
          %s324 = smul.addr %s323, 4
          %s325 = scalar_lea.vmem %s4, %s324
          %s326 = smul.u32 8, %s17
        $region36: #{basic_block_forward.2} parent=23 // pred_fallthru
          _
        // Predicated region
        $region37: #{basic_block_forward.2} parent=23 // pred_check
          %p327 = pneg %p157
        $region38: #{basic_block_forward.2} parent=23 // pred_check_branch
          %329 = sbr.rel (%p327) target = $region40
        $region39: #{basic_block_forward.2} parent=23 // pred_region
          %s330 = smul.u32 8, %s17
          %p331 = scmp.lt.s32.totalorder %s330, 15
          %s332 = scalar_select %p331, %s330, 15
          %s333 = smul.addr %s332, 4
          %s334 = scalar_lea.vmem %s5, %s333
          %s335 = smul.u32 8, %s17
        $region40: #{basic_block_forward.2} parent=23 // pred_fallthru
          _
      $region24: #{basic_block_forward.2} parent=5 // pred_fallthru
        _
      %p336 = scmp.le.s32.totalorder 1, %s17
      %p337 = scmp.lt.s32.totalorder %s17, 3
      %p338 = pnand %p336, %p337
      %p339 = pneg %p338
      // Predicated region
      $region41: #{basic_block_forward.2} parent=5 // pred_check
        _
      $region42: #{basic_block_forward.2} parent=5 // pred_check_branch
        %341 = sbr.rel (%p338) target = $region44
      $region43: #{basic_block_forward.2} parent=5 // pred_region
        %s342 = ssub.s32 %s17, 1
        // Predicated region
        $region45: #{basic_block_forward.2} parent=43 // pred_check
          %p343 = pneg %p38
        $region46: #{basic_block_forward.2} parent=43 // pred_check_branch
          %345 = sbr.rel (%p343) target = $region48
        $region47: #{basic_block_forward.2} parent=43 // pred_region
          %346 = dma.done [#allocation3], 16
        $region48: #{basic_block_forward.2} parent=43 // pred_fallthru
          _
        %347 = sfence
        %p348 = pneg %p38
        %p349 = pneg %p35
        %s350 = smul.u32 8, %s22
        %p351 = scmp.lt.s32.totalorder %s350, 15
        %s352 = scalar_select %p351, %s350, 15
        %s353 = smul.addr %s352, 4
        %s354 = scalar_lea.vmem %s1, %s353
        %p355 = pneg %p64
        %p356 = pneg %p61
        %p357 = pneg %p85
        %p358 = pneg %p82
        %s359 = smul.u32 8, %s22
        %p360 = scmp.lt.s32.totalorder %s359, 15
        %s361 = scalar_select %p360, %s359, 15
        %s362 = smul.addr %s361, 8
        %s363 = scalar_lea.vmem %s3, %s362
        %p364 = pneg %p111
        %p365 = pneg %p108
        %s366 = smul.u32 8, %s22
        %p367 = scmp.lt.s32.totalorder %s366, 15
        %s368 = scalar_select %p367, %s366, 15
        %s369 = smul.addr %s368, 4
        %s370 = scalar_lea.vmem %s4, %s369
        %p371 = pneg %p137
        %p372 = pneg %p134
        %s373 = smul.u32 8, %s22
        %p374 = scmp.lt.s32.totalorder %s373, 15
        %s375 = scalar_select %p374, %s373, 15
        %s376 = smul.addr %s375, 4
        %s377 = scalar_lea.vmem %s5, %s376
        %p378 = pneg %p163
        %p379 = pneg %p160
        %p380 = pneg %p189
        %p381 = pneg %p186
        %s382 = smul.u32 8, %s22
        %p383 = scmp.lt.s32.totalorder %s382, 15
        %s384 = scalar_select %p383, %s382, 15
        %s385 = smul.addr %s384, 4
        %s386 = scalar_lea.vmem %s6, %s385
        %p387 = pneg %p215
        %p388 = pneg %p212
        %s389 = smul.u32 8, %s22
        %p390 = scmp.lt.s32.totalorder %s389, 15
        %s391 = scalar_select %p390, %s389, 15
        %s392 = smul.addr %s391, 8
        %s393 = scalar_lea.vmem %s7, %s392
        %p394 = pneg %p241
        %p395 = pneg %p238
        %s396 = smul.u32 8, %s22
        %p397 = scmp.lt.s32.totalorder %s396, 15
        %s398 = scalar_select %p397, %s396, 15
        %s399 = smul.addr %s398, 4
        %s400 = scalar_lea.vmem %s8, %s399
        %p401 = pneg %p267
        %p402 = pneg %p264
        %p403 = scmp.lt.s32.totalorder %s22, 1
        %s404 = scalar_select %p403, %s22, 1
        %s405 = smul.addr %s404, 8
        %s406 = scalar_lea.vmem %s9, %s405
        %s407 = smul.u32 8, %s22
        %p408 = scmp.lt.s32.totalorder %s407, 15
        %s409 = scalar_select %p408, %s407, 15
        %s410 = smul.addr %s409, 4
        %s411 = scalar_lea.vmem %s1, %s410
        %s412 = smul.u32 8, %s22
        %s413 = smul.u32 8, %s22
        %p414 = scmp.lt.s32.totalorder %s413, 15
        %s415 = scalar_select %p414, %s413, 15
        %s416 = smul.addr %s415, 8
        %s417 = scalar_lea.vmem %s3, %s416
        %s418 = smul.u32 8, %s22
        %s419 = smul.u32 8, %s22
        %p420 = scmp.lt.s32.totalorder %s419, 15
        %s421 = scalar_select %p420, %s419, 15
        %s422 = smul.addr %s421, 4
        %s423 = scalar_lea.vmem %s4, %s422
        %s424 = smul.u32 8, %s22
        %s425 = smul.u32 8, %s22
        %p426 = scmp.lt.s32.totalorder %s425, 15
        %s427 = scalar_select %p426, %s425, 15
        %s428 = smul.addr %s427, 4
        %s429 = scalar_lea.vmem %s5, %s428
        %s430 = smul.u32 8, %s22
        %s431 = smul.u32 8, %s22
        %p432 = scmp.lt.s32.totalorder %s431, 15
        %s433 = scalar_select %p432, %s431, 15
        %s434 = smul.addr %s433, 4
        %s435 = scalar_lea.vmem %s6, %s434
        %s436 = smul.u32 8, %s22
        %s437 = smul.u32 8, %s22
        %p438 = scmp.lt.s32.totalorder %s437, 15
        %s439 = scalar_select %p438, %s437, 15
        %s440 = smul.addr %s439, 8
        %s441 = scalar_lea.vmem %s7, %s440
        %s442 = smul.u32 8, %s22
        %s443 = smul.u32 8, %s22
        %p444 = scmp.lt.s32.totalorder %s443, 15
        %s445 = scalar_select %p444, %s443, 15
        %s446 = smul.addr %s445, 4
        %s447 = scalar_lea.vmem %s8, %s446
        %s448 = smul.u32 8, %s22
        %p449 = scmp.lt.s32.totalorder %s22, 1
        %s450 = scalar_select %p449, %s22, 1
        %s451 = smul.addr %s450, 8
        %s452 = scalar_lea.vmem %s9, %s451
        %s454 = sld [smem:[#allocation2]]
        %s455 = sld [smem:[#allocation2 + $0x1]]
        %s456 = sld [smem:[#allocation2 + $0x2]]
        %v457 = vld [vmem:[%s411] sm:$0xf]
        %v458 = vld [vmem:[%s411 + $0x4] sm:$0xf]
        %v459 = vld [vmem:[%s411 + $0x8] sm:$0xf]
        %v460 = vld [vmem:[%s411 + $0xc] sm:$0xf]
        %v461 = vld [vmem:[%s411 + $0x10] sm:$0xf]
        %v462 = vld [vmem:[%s411 + $0x14] sm:$0xf]
        %v463 = vld [vmem:[%s411 + $0x18] sm:$0xf]
        %v464 = vld [vmem:[%s411 + $0x1c] sm:$0xf]
        %v465 = vld [vmem:[%s2] sm:$0xf]
        %v466 = vld [vmem:[%s2 + $0x4] sm:$0xf]
        %v467 = vld [vmem:[%s2 + $0x8] sm:$0xf]
        %v468 = vld [vmem:[%s2 + $0xc] sm:$0xf]
        %v469 = vld [vmem:[%s2 + $0x10] sm:$0x3]
        %v478 = vunpack.c.l.b16 %v457
        %v479 = vunpack.c.l.b16 %v458
        %v480 = vunpack.c.l.b16 %v459
        %v481 = vunpack.c.l.b16 %v460
        %v482 = vunpack.c.l.b16 %v461
        %v483 = vunpack.c.l.b16 %v462
        %v484 = vunpack.c.l.b16 %v463
        %v485 = vunpack.c.l.b16 %v464
        %v486 = vpack.c.b16 %v479, %v478
        %v487 = vpack.c.b16 %v481, %v480
        %v488 = vpack.c.b16 %v483, %v482
        %v489 = vpack.c.b16 %v485, %v484
        %v495 = vunpack.c.l.b16 %v465
        %v496 = vunpack.c.l.b16 %v466
        %v497 = vunpack.c.l.b16 %v467
        %v498 = vunpack.c.l.b16 %v468
        %v499 = vunpack.c.l.b16 %v469
        %v500 = vpack.c.b16 %v496, %v495
        %v501 = vpack.c.b16 %v498, %v497
        %v502 = vpack.c.b16 %v499, %v499
        %vm505 = vcmask 293888
        %v507 = vsel %vm505, %v486, 0
        %v510 = vsel %vm505, %v487, 0
        %v513 = vsel %vm505, %v488, 0
        %v516 = vsel %vm505, %v489, 0
        %vm518 = vcmask 1041408
        %v520 = vsel %vm518, %v502, 0
        %522 = vmatprep.subr.bf16.mxu0 0
        %523 = vmatpush1.bf16.msra.mxu0 %v500
        %524 = vmatprep.subr.bf16.mxu0 0
        %525 = vmatpush1.bf16.msra.mxu0 %v501
        %526 = vmatprep.subr.bf16.mxu0 0
        %527 = vmatpush1.bf16.msra.mxu0 %v520
        %528 = vmatprep.subr.bf16.mxu0 0
        %529 = vmatpush1.bf16.msra.mxu0 0
        %530 = vmatprep.subr.bf16.mxu0 0
        %531 = vmatpush1.bf16.msra.mxu0 0
        %532 = vmatprep.subr.bf16.mxu0 0
        %533 = vmatpush1.bf16.msra.mxu0 0
        %534 = vmatprep.subr.bf16.mxu0 0
        %535 = vmatpush1.bf16.msra.mxu0 0
        %536 = vmatprep.subr.bf16.mxu0 0
        %537 = vmatpush1.bf16.msra.mxu0 0
        %538 = vmatprep.subr.bf16.mxu0 0
        %539 = vmatpush1.bf16.msra.mxu0 0
        %540 = vmatprep.subr.bf16.mxu0 0
        %541 = vmatpush1.bf16.msra.mxu0 0
        %542 = vmatprep.subr.bf16.mxu0 0
        %543 = vmatpush1.bf16.msra.mxu0 0
        %544 = vmatprep.subr.bf16.mxu0 0
        %545 = vmatpush1.bf16.msra.mxu0 0
        %546 = vmatprep.subr.bf16.mxu0 0
        %547 = vmatpush1.bf16.msra.mxu0 0
        %548 = vmatprep.subr.bf16.mxu0 0
        %549 = vmatpush1.bf16.msra.mxu0 0
        %550 = vmatprep.subr.bf16.mxu0 0
        %551 = vmatpush1.bf16.msra.mxu0 0
        %552 = vmatprep.subr.bf16.mxu0 0
        %553 = vmatpush1.bf16.msra.mxu0 0
        %554 = vmatprep.mubr.bf16.mxu0 0
        %555 = vmatmul.mubr.bf16.gmra.mrb[0].mxu0 %v507
        %v556 = vpop.f32.mrb[0].mxu0
        %v557 = vadd.f32 0.0, %v556
        %v558 = vpop.f32.mrb[0].mxu0
        %v559 = vpop.f32.mrb[0].mxu0
        %v560 = vadd.f32 0.0, %v559
        %v561 = vpop.f32.mrb[0].mxu0
        %562 = vmatprep.mubr.bf16.mxu0 0
        %563 = vmatmul.mubr.bf16.gmra.mrb[0].mxu0 %v510
        %v564 = vpop.f32.mrb[0].mxu0
        %v565 = vadd.f32 0.0, %v564
        %v566 = vpop.f32.mrb[0].mxu0
        %v567 = vpop.f32.mrb[0].mxu0
        %v568 = vadd.f32 0.0, %v567
        %v569 = vpop.f32.mrb[0].mxu0
        %570 = vmatprep.mubr.bf16.mxu0 0
        %571 = vmatmul.mubr.bf16.gmra.mrb[0].mxu0 %v513
        %v572 = vpop.f32.mrb[0].mxu0
        %v573 = vadd.f32 0.0, %v572
        %v574 = vpop.f32.mrb[0].mxu0
        %v575 = vpop.f32.mrb[0].mxu0
        %v576 = vadd.f32 0.0, %v575
        %v577 = vpop.f32.mrb[0].mxu0
        %578 = vmatprep.mubr.bf16.mxu0 0
        %579 = vmatmul.mubr.bf16.gmra.mrb[0].mxu0 %v516
        %v580 = vpop.f32.mrb[0].mxu0
        %v581 = vadd.f32 0.0, %v580
        %v582 = vpop.f32.mrb[0].mxu0
        %v583 = vpop.f32.mrb[0].mxu0
        %v584 = vadd.f32 0.0, %v583
        %v585 = vpop.f32.mrb[0].mxu0
        %586 = vdwg.mxu0
        %v587 = vld [vmem:[%s417] sm:$0xff]
        %v588 = vld [vmem:[%s417 + $0x8] sm:$0xff]
        %v589 = vld [vmem:[%s417 + $0x10] sm:$0xff]
        %v590 = vld [vmem:[%s417 + $0x18] sm:$0xff]
        %v591 = vld [vmem:[%s417 + $0x20] sm:$0xff]
        %v592 = vld [vmem:[%s417 + $0x28] sm:$0xff]
        %v593 = vld [vmem:[%s417 + $0x30] sm:$0xff]
        %v594 = vld [vmem:[%s417 + $0x38] sm:$0xff]
        %v595 = vstv %s454
        %v596 = vmul.f32 %v595, %v587
        %v597 = vmul.f32 %v595, %v588
        %v598 = vmul.f32 %v595, %v589
        %v599 = vmul.f32 %v595, %v590
        %v600 = vmul.f32 %v595, %v591
        %v601 = vmul.f32 %v595, %v592
        %v602 = vmul.f32 %v595, %v593
        %v603 = vmul.f32 %v595, %v594
        %v604 = vadd.f32 %v596, %v557
        %v605 = vadd.f32 %v597, %v560
        %v606 = vadd.f32 %v598, %v565
        %v607 = vadd.f32 %v599, %v568
        %v608 = vadd.f32 %v600, %v573
        %v609 = vadd.f32 %v601, %v576
        %v610 = vadd.f32 %v602, %v581
        %v611 = vadd.f32 %v603, %v584
        %v612 = vstv %s455
        %vm613 = vcmp.gt.f32.partialorder %v604, %v612
        %vm614 = vcmp.gt.f32.partialorder %v605, %v612
        %vm615 = vcmp.gt.f32.partialorder %v606, %v612
        %vm616 = vcmp.gt.f32.partialorder %v607, %v612
        %vm617 = vcmp.gt.f32.partialorder %v608, %v612
        %vm618 = vcmp.gt.f32.partialorder %v609, %v612
        %vm619 = vcmp.gt.f32.partialorder %v610, %v612
        %vm620 = vcmp.gt.f32.partialorder %v611, %v612
        %v621 = vsel %vm613, 1, 0
        %v622 = vsel %vm614, 1, 0
        %v623 = vsel %vm615, 1, 0
        %v624 = vsel %vm616, 1, 0
        %v625 = vsel %vm617, 1, 0
        %v626 = vsel %vm618, 1, 0
        %v627 = vsel %vm619, 1, 0
        %v628 = vsel %vm620, 1, 0
        %v629 = vcvt.s32.f32 %v621
        %v630 = vcvt.s32.f32 %v622
        %v631 = vcvt.s32.f32 %v623
        %v632 = vcvt.s32.f32 %v624
        %v633 = vcvt.s32.f32 %v625
        %v634 = vcvt.s32.f32 %v626
        %v635 = vcvt.s32.f32 %v627
        %v636 = vcvt.s32.f32 %v628
        %v637 = vmul.f32 %v612, %v629
        %v638 = vmul.f32 %v612, %v630
        %v639 = vmul.f32 %v612, %v631
        %v640 = vmul.f32 %v612, %v632
        %v641 = vmul.f32 %v612, %v633
        %v642 = vmul.f32 %v612, %v634
        %v643 = vmul.f32 %v612, %v635
        %v644 = vmul.f32 %v612, %v636
        %v645 = vsub.f32 %v604, %v637
        %v646 = vsub.f32 %v605, %v638
        %v647 = vsub.f32 %v606, %v639
        %v648 = vsub.f32 %v607, %v640
        %v649 = vsub.f32 %v608, %v641
        %v650 = vsub.f32 %v609, %v642
        %v651 = vsub.f32 %v610, %v643
        %v652 = vsub.f32 %v611, %v644
        %653 = vst [vmem:[%s441] sm:$0xff] %v645
        %654 = vst [vmem:[%s441 + $0x8] sm:$0xff] %v646
        %655 = vst [vmem:[%s441 + $0x10] sm:$0xff] %v647
        %656 = vst [vmem:[%s441 + $0x18] sm:$0xff] %v648
        %657 = vst [vmem:[%s441 + $0x20] sm:$0xff] %v649
        %658 = vst [vmem:[%s441 + $0x28] sm:$0xff] %v650
        %659 = vst [vmem:[%s441 + $0x30] sm:$0xff] %v651
        %660 = vst [vmem:[%s441 + $0x38] sm:$0xff] %v652
        %v661 = vld [vmem:[%s423] sm:$0xf]
        %v662 = vld [vmem:[%s423 + $0x4] sm:$0xf]
        %v663 = vld [vmem:[%s423 + $0x8] sm:$0xf]
        %v664 = vld [vmem:[%s423 + $0xc] sm:$0xf]
        %v665 = vld [vmem:[%s423 + $0x10] sm:$0xf]
        %v666 = vld [vmem:[%s423 + $0x14] sm:$0xf]
        %v667 = vld [vmem:[%s423 + $0x18] sm:$0xf]
        %v668 = vld [vmem:[%s423 + $0x1c] sm:$0xf]
        %v669 = vunpack.c.l.bf16 %v661
        %v670 = vunpack.c.l.bf16 %v662
        %v671 = vunpack.c.l.bf16 %v663
        %v672 = vunpack.c.l.bf16 %v664
        %v673 = vunpack.c.l.bf16 %v665
        %v674 = vunpack.c.l.bf16 %v666
        %v675 = vunpack.c.l.bf16 %v667
        %v676 = vunpack.c.l.bf16 %v668
        %v677 = vstv %s456
        %v678 = vsel %vm613, %v677, %v669
        %v679 = vsel %vm614, %v677, %v670
        %v680 = vsel %vm615, %v677, %v671
        %v681 = vsel %vm616, %v677, %v672
        %v682 = vsel %vm617, %v677, %v673
        %v683 = vsel %vm618, %v677, %v674
        %v684 = vsel %vm619, %v677, %v675
        %v685 = vsel %vm620, %v677, %v676
        %v686 = vpack.c.bf16 %v679, %v678
        %v687 = vpack.c.bf16 %v681, %v680
        %v688 = vpack.c.bf16 %v683, %v682
        %v689 = vpack.c.bf16 %v685, %v684
        %v694 = vunpack.c.l.b16 %v686
        %v695 = vunpack.c.h.b16 %v686
        %v696 = vunpack.c.l.b16 %v687
        %v697 = vunpack.c.h.b16 %v687
        %v698 = vunpack.c.l.b16 %v688
        %v699 = vunpack.c.h.b16 %v688
        %v700 = vunpack.c.l.b16 %v689
        %v701 = vunpack.c.h.b16 %v689
        %v702 = vpack.c.b16 %v694, %v694
        %v703 = vpack.c.b16 %v695, %v695
        %v704 = vpack.c.b16 %v696, %v696
        %v705 = vpack.c.b16 %v697, %v697
        %v706 = vpack.c.b16 %v698, %v698
        %v707 = vpack.c.b16 %v699, %v699
        %v708 = vpack.c.b16 %v700, %v700
        %v709 = vpack.c.b16 %v701, %v701
        %718 = vst [vmem:[%s447] sm:$0xf] %v702
        %719 = vst [vmem:[%s447 + $0x4] sm:$0xf] %v703
        %720 = vst [vmem:[%s447 + $0x8] sm:$0xf] %v704
        %721 = vst [vmem:[%s447 + $0xc] sm:$0xf] %v705
        %722 = vst [vmem:[%s447 + $0x10] sm:$0xf] %v706
        %723 = vst [vmem:[%s447 + $0x14] sm:$0xf] %v707
        %724 = vst [vmem:[%s447 + $0x18] sm:$0xf] %v708
        %725 = vst [vmem:[%s447 + $0x1c] sm:$0xf] %v709
        %v726 = vld [vmem:[%s429] sm:$0xf]
        %v727 = vld [vmem:[%s429 + $0x4] sm:$0xf]
        %v728 = vld [vmem:[%s429 + $0x8] sm:$0xf]
        %v729 = vld [vmem:[%s429 + $0xc] sm:$0xf]
        %v730 = vld [vmem:[%s429 + $0x10] sm:$0xf]
        %v731 = vld [vmem:[%s429 + $0x14] sm:$0xf]
        %v732 = vld [vmem:[%s429 + $0x18] sm:$0xf]
        %v733 = vld [vmem:[%s429 + $0x1c] sm:$0xf]
        %v734 = vunpack.c.l.bf16 %v726
        %v735 = vunpack.c.l.bf16 %v727
        %v736 = vunpack.c.l.bf16 %v728
        %v737 = vunpack.c.l.bf16 %v729
        %v738 = vunpack.c.l.bf16 %v730
        %v739 = vunpack.c.l.bf16 %v731
        %v740 = vunpack.c.l.bf16 %v732
        %v741 = vunpack.c.l.bf16 %v733
        %v742 = vmul.f32 %v629, %v734
        %v743 = vmul.f32 %v630, %v735
        %v744 = vmul.f32 %v631, %v736
        %v745 = vmul.f32 %v632, %v737
        %v746 = vmul.f32 %v633, %v738
        %v747 = vmul.f32 %v634, %v739
        %v748 = vmul.f32 %v635, %v740
        %v749 = vmul.f32 %v636, %v741
        %v750 = vpack.c.bf16 %v743, %v742
        %v751 = vpack.c.bf16 %v745, %v744
        %v752 = vpack.c.bf16 %v747, %v746
        %v753 = vpack.c.bf16 %v749, %v748
        %v758 = vunpack.c.l.b16 %v750
        %v759 = vunpack.c.h.b16 %v750
        %v760 = vunpack.c.l.b16 %v751
        %v761 = vunpack.c.h.b16 %v751
        %v762 = vunpack.c.l.b16 %v752
        %v763 = vunpack.c.h.b16 %v752
        %v764 = vunpack.c.l.b16 %v753
        %v765 = vunpack.c.h.b16 %v753
        %v766 = vpack.c.b16 %v758, %v758
        %v767 = vpack.c.b16 %v759, %v759
        %v768 = vpack.c.b16 %v760, %v760
        %v769 = vpack.c.b16 %v761, %v761
        %v770 = vpack.c.b16 %v762, %v762
        %v771 = vpack.c.b16 %v763, %v763
        %v772 = vpack.c.b16 %v764, %v764
        %v773 = vpack.c.b16 %v765, %v765
        %782 = vst [vmem:[%s435] sm:$0xf] %v766
        %783 = vst [vmem:[%s435 + $0x4] sm:$0xf] %v767
        %784 = vst [vmem:[%s435 + $0x8] sm:$0xf] %v768
        %785 = vst [vmem:[%s435 + $0xc] sm:$0xf] %v769
        %786 = vst [vmem:[%s435 + $0x10] sm:$0xf] %v770
        %787 = vst [vmem:[%s435 + $0x14] sm:$0xf] %v771
        %788 = vst [vmem:[%s435 + $0x18] sm:$0xf] %v772
        %789 = vst [vmem:[%s435 + $0x1c] sm:$0xf] %v773
        %v790 = vadd.f32 %v742, %v743
        %v791 = vadd.f32 %v790, %v744
        %v792 = vadd.f32 %v791, %v745
        %v793 = vadd.f32 %v792, %v746
        %v794 = vadd.f32 %v793, %v747
        %v795 = vadd.f32 %v794, %v748
        %v796 = vadd.f32 %v795, %v749
        %v797 = vrot.slane %v796, 4
        %v798 = vadd.f32 %v796, %v797
        %v799 = vrot.slane %v798, 2
        %v800 = vadd.f32 %v798, %v799
        %v801 = vrot.slane %v800, 1
        %v802 = vadd.f32 %v800, %v801
        %803 = vst [vmem:[%s452] sm:$0xff] %v802
        %s804 = smul.u32 8, %s22
        %p805 = scmp.lt.s32.totalorder %s804, 15
        %s806 = scalar_select %p805, %s804, 15
        %s807 = smul.addr %s806, 4
        %s808 = scalar_lea.vmem %s6, %s807
        %s809 = smul.u32 8, %s22
        %p810 = scmp.lt.s32.totalorder %s809, 15
        %s811 = scalar_select %p810, %s809, 15
        %s812 = smul.addr %s811, 8
        %s813 = scalar_lea.vmem %s7, %s812
        %s814 = smul.u32 8, %s22
        %p815 = scmp.lt.s32.totalorder %s814, 15
        %s816 = scalar_select %p815, %s814, 15
        %s817 = smul.addr %s816, 4
        %s818 = scalar_lea.vmem %s8, %s817
        %p819 = scmp.lt.s32.totalorder %s22, 1
        %s820 = scalar_select %p819, %s22, 1
        %s821 = smul.addr %s820, 8
        %s822 = scalar_lea.vmem %s9, %s821
        // Predicated region
        $region49: #{basic_block_forward.2} parent=43 // pred_check
          %p823 = pneg %p186
        $region50: #{basic_block_forward.2} parent=43 // pred_check_branch
          %825 = sbr.rel (%p823) target = $region52
        $region51: #{basic_block_forward.2} parent=43 // pred_region
          %s826 = smul.u32 8, %s22
        $region52: #{basic_block_forward.2} parent=43 // pred_fallthru
          _
        // Predicated region
        $region53: #{basic_block_forward.2} parent=43 // pred_check
          %p827 = pneg %p212
        $region54: #{basic_block_forward.2} parent=43 // pred_check_branch
          %829 = sbr.rel (%p827) target = $region56
        $region55: #{basic_block_forward.2} parent=43 // pred_region
          %s830 = smul.u32 8, %s22
        $region56: #{basic_block_forward.2} parent=43 // pred_fallthru
          _
        // Predicated region
        $region57: #{basic_block_forward.2} parent=43 // pred_check
          %p831 = pneg %p238
        $region58: #{basic_block_forward.2} parent=43 // pred_check_branch
          %833 = sbr.rel (%p831) target = $region60
        $region59: #{basic_block_forward.2} parent=43 // pred_region
          %s834 = smul.u32 8, %s22
        $region60: #{basic_block_forward.2} parent=43 // pred_fallthru
          _
        // Predicated region
        $region61: #{basic_block_forward.2} parent=43 // pred_check
          %p835 = pneg %p264
        $region62: #{basic_block_forward.2} parent=43 // pred_check_branch
          %837 = sbr.rel (%p835) target = $region64
        $region63: #{basic_block_forward.2} parent=43 // pred_region
          _
        $region64: #{basic_block_forward.2} parent=43 // pred_fallthru
          _
      $region44: #{basic_block_forward.2} parent=5 // pred_fallthru
        _
      %p838 = scmp.le.s32.totalorder 2, %s17
      // Predicated region
      $region65: #{basic_block_forward.2} parent=5 // pred_check
        %p839 = pneg %p838
      $region66: #{basic_block_forward.2} parent=5 // pred_check_branch
        %841 = sbr.rel (%p839) target = $region68
      $region67: #{basic_block_forward.2} parent=5 // pred_region
        %s842 = ssub.s32 %s17, 2
        // Predicated region
        $region69: #{basic_block_forward.2} parent=67 // pred_check
          %p843 = pneg %p192
        $region70: #{basic_block_forward.2} parent=67 // pred_check_branch
          %845 = sbr.rel (%p843) target = $region72
        $region71: #{basic_block_forward.2} parent=67 // pred_region
          %s846 = smul.u32 8, %s23
          %p847 = scmp.lt.s32.totalorder %s846, 15
          %s848 = scalar_select %p847, %s846, 15
          %s849 = smul.addr %s848, 4
          %s850 = scalar_lea.vmem %s6, %s849
        $region72: #{basic_block_forward.2} parent=67 // pred_fallthru
          _
        // Predicated region
        $region73: #{basic_block_forward.2} parent=67 // pred_check
          %p851 = pneg %p218
        $region74: #{basic_block_forward.2} parent=67 // pred_check_branch
          %853 = sbr.rel (%p851) target = $region76
        $region75: #{basic_block_forward.2} parent=67 // pred_region
          %s854 = smul.u32 8, %s23
          %p855 = scmp.lt.s32.totalorder %s854, 15
          %s856 = scalar_select %p855, %s854, 15
          %s857 = smul.addr %s856, 8
          %s858 = scalar_lea.vmem %s7, %s857
        $region76: #{basic_block_forward.2} parent=67 // pred_fallthru
          _
        // Predicated region
        $region77: #{basic_block_forward.2} parent=67 // pred_check
          %p859 = pneg %p244
        $region78: #{basic_block_forward.2} parent=67 // pred_check_branch
          %861 = sbr.rel (%p859) target = $region80
        $region79: #{basic_block_forward.2} parent=67 // pred_region
          %s862 = smul.u32 8, %s23
          %p863 = scmp.lt.s32.totalorder %s862, 15
          %s864 = scalar_select %p863, %s862, 15
          %s865 = smul.addr %s864, 4
          %s866 = scalar_lea.vmem %s8, %s865
        $region80: #{basic_block_forward.2} parent=67 // pred_fallthru
          _
        // Predicated region
        $region81: #{basic_block_forward.2} parent=67 // pred_check
          %p867 = pneg %p270
        $region82: #{basic_block_forward.2} parent=67 // pred_check_branch
          %869 = sbr.rel (%p867) target = $region84
        $region83: #{basic_block_forward.2} parent=67 // pred_region
          %p870 = scmp.lt.s32.totalorder %s23, 1
          %s871 = scalar_select %p870, %s23, 1
          %s872 = smul.addr %s871, 8
          %s873 = scalar_lea.vmem %s9, %s872
        $region84: #{basic_block_forward.2} parent=67 // pred_fallthru
          _
      $region68: #{basic_block_forward.2} parent=5 // pred_fallthru
        _
    $region6: #{basic_block_forward.2} parent=1 // loop_footer
      %s21 = sadd.s32 1, %s17
    $region7: #{basic_block_forward.2} parent=1 // loop_footer_branch
      %16 = sbr.rel target = $region3
    $region8: #{basic_block_forward.2} parent=1 // loop_exit
      _
    %874 = vsyncpa [#allocation3], 1
    %s875 = scalar_lea.sflag [#allocation3], 1
    %876 = vsyncpa %s875, 1

// kernel: basic_block_forward.3
$region0: #{basic_block_forward.3}
  #allocation0 [shape = 'u32[]', space=smem, size = 0x4, offset = 0x4, fixed_abs, tag = 'smem constant byte address 0x4 - core index']
  #allocation1 [shape = 'u32[144,128]{1,0:T(1,128)}', space=vmem, size = 0x12000, scoped, tag = 'internal scratch']
  %s0 = inlined_call_operand.vmem [shape: f32[3], index: 0, kind: input, shape index: {}]
  %s1 = inlined_call_operand.vmem [shape: bf16[128,72], index: 1, kind: input, shape index: {}]
  %s2 = inlined_call_operand.vmem [shape: bf16[72,128], index: 2, kind: input, shape index: {}]
  %s3 = inlined_call_operand.vmem [shape: bf16[128,4], index: 3, kind: input, shape index: {}]
  %s4 = inlined_call_operand.vmem [shape: bf16[4,128], index: 4, kind: input, shape index: {}]
  %s5 = inlined_call_operand.vmem [shape: f32[128,128], index: 5, kind: input, shape index: {}, may-alias: {5,8}]
  %s6 = inlined_call_operand.vmem [shape: bf16[128,128], index: 6, kind: input, shape index: {}, may-alias: {6,9}]
  %s7 = inlined_call_operand.vmem [shape: bf16[128,128], index: 7, kind: output, shape index: {0}]
  %s8 = inlined_call_operand.vmem [shape: f32[128,128], index: 8, kind: output, shape index: {1}, may-alias: {5,8}]
  %s9 = inlined_call_operand.vmem [shape: bf16[128,128], index: 9, kind: output, shape index: {2}, may-alias: {6,9}]
  %10 = xla_tuple %s7, %s8, %s9
  %s11 = sld [smem:[#allocation0]]
  $region81: #{basic_block_forward.3} parent=0
    _
  %s13 = ssub.s32 1, %s11
  %s14 = scalar_select 0, %s13, %s11
  $region1: #{basic_block_forward.3} parent=0
    #allocation2 [shape = 'u8[512]{0}', space=smem, size = 0x200, scoped, tag = 'input window, operand 0, single buffered']
    #allocation3 [shape = 's32[2]{0}', space=sflag, size = 0x8, scoped, tag = 'scoped memory for basic_block_forward.3']
    %15 = vsyncpa [#allocation3], 0
    loop: start=0, step=1, limit=4
    $region2: #{basic_block_forward.3} parent=1 // loop_pre_header
      _
    $region3: #{basic_block_forward.3} parent=1 // loop_header
      %s17 = sphi 0, %s21
      %p18 = scmp.ge.s32.totalorder %s17, 4
      %s25 = sphi 0, %s25
      %s27 = sphi 0, %s25
      %s28 = sphi 0, %s27
      %s42 = sphi 0, %s28
      %s48 = sphi 0, %s50
      %s51 = sphi 0, %s48
      %s52 = sphi 0, %s51
      %s68 = sphi 0, %s52
      %s72 = sphi 0, %s72
      %s74 = sphi 0, %s72
      %s75 = sphi 0, %s74
      %s89 = sphi 0, %s75
      %s95 = sphi 0, %s97
      %s98 = sphi 0, %s95
      %s99 = sphi 0, %s98
      %s115 = sphi 0, %s99
      %s119 = sphi 0, %s119
      %s121 = sphi 0, %s119
      %s122 = sphi 0, %s121
      %s136 = sphi 0, %s122
      %s142 = sphi 0, %s144
      %s145 = sphi 0, %s142
      %s146 = sphi 0, %s145
      %s162 = sphi 0, %s146
      %s168 = sphi 0, %s170
      %s171 = sphi 0, %s168
      %s172 = sphi 0, %s171
      %s188 = sphi 0, %s172
      %s194 = sphi 0, %s196
      %s197 = sphi 0, %s194
      %s198 = sphi 0, %s197
      %s214 = sphi 0, %s198
      %s220 = sphi 0, %s222
      %s223 = sphi 0, %s220
      %s224 = sphi 0, %s223
      %s240 = sphi 0, %s224
      %s246 = sphi 0, %s248
      %s249 = sphi 0, %s246
      %s250 = sphi 0, %s249
      %s266 = sphi 0, %s250
    $region4: #{basic_block_forward.3} parent=1 // loop_header_branch
      %20 = sbr.rel (%p18) target = $region8
    $region5: #{basic_block_forward.3} parent=1 // loop_body
      %s22 = ssub.s32 %s17, 1
      %s23 = ssub.s32 %s17, 2
      %s24 = sadd.s32 %s17, 1
      %s26 = sadd.s32 %s25, 1
      %p29 = scmp.eq.s32.totalorder %s17, 1
      %p30 = scmp.ne.s32.totalorder %s25, %s27
      %p31 = scmp.eq.s32.totalorder %s17, 0
      %p32 = por %p30, %p31
      %p33 = scmp.ne.s32.totalorder %s25, %s27
      %p34 = scmp.eq.s32.totalorder %s22, 1
      %p35 = por %p33, %p34
      %p36 = scmp.ne.s32.totalorder %s27, %s28
      %p37 = scmp.eq.s32.totalorder %s22, 0
      %p38 = por %p36, %p37
      %p39 = scmp.ne.s32.totalorder %s27, %s28
      %p40 = scmp.eq.s32.totalorder %s23, 1
      %p41 = por %p39, %p40
      %p43 = scmp.ne.s32.totalorder %s28, %s42
      %p44 = scmp.eq.s32.totalorder %s23, 0
      %p45 = por %p43, %p44
      %s46 = ssub.s32 %s17, %s24
      %p47 = scmp.eq.s32.totalorder %s46, 0
      %s49 = sadd.s32 %s48, 1
      %s50 = scalar_select %p47, %s48, %s49
      %p53 = pneg %p47
      %p54 = scmp.eq.s32.totalorder %s17, 1
      %p55 = por %p53, %p54
      %p56 = scmp.ne.s32.totalorder %s48, %s51
      %p57 = scmp.eq.s32.totalorder %s17, 0
      %p58 = por %p56, %p57
      %p59 = scmp.ne.s32.totalorder %s48, %s51
      %p60 = scmp.eq.s32.totalorder %s22, 1
      %p61 = por %p59, %p60
      %p62 = scmp.ne.s32.totalorder %s51, %s52
      %p63 = scmp.eq.s32.totalorder %s22, 0
      %p64 = por %p62, %p63
      %p65 = scmp.ne.s32.totalorder %s51, %s52
      %p66 = scmp.eq.s32.totalorder %s23, 1
      %p67 = por %p65, %p66
      %p69 = scmp.ne.s32.totalorder %s52, %s68
      %p70 = scmp.eq.s32.totalorder %s23, 0
      %p71 = por %p69, %p70
      %s73 = sadd.s32 %s72, 1
      %p76 = scmp.eq.s32.totalorder %s17, 1
      %p77 = scmp.ne.s32.totalorder %s72, %s74
      %p78 = scmp.eq.s32.totalorder %s17, 0
      %p79 = por %p77, %p78
      %p80 = scmp.ne.s32.totalorder %s72, %s74
      %p81 = scmp.eq.s32.totalorder %s22, 1
      %p82 = por %p80, %p81
      %p83 = scmp.ne.s32.totalorder %s74, %s75
      %p84 = scmp.eq.s32.totalorder %s22, 0
      %p85 = por %p83, %p84
      %p86 = scmp.ne.s32.totalorder %s74, %s75
      %p87 = scmp.eq.s32.totalorder %s23, 1
      %p88 = por %p86, %p87
      %p90 = scmp.ne.s32.totalorder %s75, %s89
      %p91 = scmp.eq.s32.totalorder %s23, 0
      %p92 = por %p90, %p91
      %s93 = ssub.s32 %s17, %s24
      %p94 = scmp.eq.s32.totalorder %s93, 0
      %s96 = sadd.s32 %s95, 1
      %s97 = scalar_select %p94, %s95, %s96
      %p100 = pneg %p94
      %p101 = scmp.eq.s32.totalorder %s17, 1
      %p102 = por %p100, %p101
      %p103 = scmp.ne.s32.totalorder %s95, %s98
      %p104 = scmp.eq.s32.totalorder %s17, 0
      %p105 = por %p103, %p104
      %p106 = scmp.ne.s32.totalorder %s95, %s98
      %p107 = scmp.eq.s32.totalorder %s22, 1
      %p108 = por %p106, %p107
      %p109 = scmp.ne.s32.totalorder %s98, %s99
      %p110 = scmp.eq.s32.totalorder %s22, 0
      %p111 = por %p109, %p110
      %p112 = scmp.ne.s32.totalorder %s98, %s99
      %p113 = scmp.eq.s32.totalorder %s23, 1
      %p114 = por %p112, %p113
      %p116 = scmp.ne.s32.totalorder %s99, %s115
      %p117 = scmp.eq.s32.totalorder %s23, 0
      %p118 = por %p116, %p117
      %s120 = sadd.s32 %s119, 1
      %p123 = scmp.eq.s32.totalorder %s17, 1
      %p124 = scmp.ne.s32.totalorder %s119, %s121
      %p125 = scmp.eq.s32.totalorder %s17, 0
      %p126 = por %p124, %p125
      %p127 = scmp.ne.s32.totalorder %s119, %s121
      %p128 = scmp.eq.s32.totalorder %s22, 1
      %p129 = por %p127, %p128
      %p130 = scmp.ne.s32.totalorder %s121, %s122
      %p131 = scmp.eq.s32.totalorder %s22, 0
      %p132 = por %p130, %p131
      %p133 = scmp.ne.s32.totalorder %s121, %s122
      %p134 = scmp.eq.s32.totalorder %s23, 1
      %p135 = por %p133, %p134
      %p137 = scmp.ne.s32.totalorder %s122, %s136
      %p138 = scmp.eq.s32.totalorder %s23, 0
      %p139 = por %p137, %p138
      %s140 = ssub.s32 %s17, %s24
      %p141 = scmp.eq.s32.totalorder %s140, 0
      %s143 = sadd.s32 %s142, 1
      %s144 = scalar_select %p141, %s142, %s143
      %p147 = pneg %p141
      %p148 = scmp.eq.s32.totalorder %s17, 1
      %p149 = por %p147, %p148
      %p150 = scmp.ne.s32.totalorder %s142, %s145
      %p151 = scmp.eq.s32.totalorder %s17, 0
      %p152 = por %p150, %p151
      %p153 = scmp.ne.s32.totalorder %s142, %s145
      %p154 = scmp.eq.s32.totalorder %s22, 1
      %p155 = por %p153, %p154
      %p156 = scmp.ne.s32.totalorder %s145, %s146
      %p157 = scmp.eq.s32.totalorder %s22, 0
      %p158 = por %p156, %p157
      %p159 = scmp.ne.s32.totalorder %s145, %s146
      %p160 = scmp.eq.s32.totalorder %s23, 1
      %p161 = por %p159, %p160
      %p163 = scmp.ne.s32.totalorder %s146, %s162
      %p164 = scmp.eq.s32.totalorder %s23, 0
      %p165 = por %p163, %p164
      %s166 = ssub.s32 %s17, %s24
      %p167 = scmp.eq.s32.totalorder %s166, 0
      %s169 = sadd.s32 %s168, 1
      %s170 = scalar_select %p167, %s168, %s169
      %p173 = pneg %p167
      %p174 = scmp.eq.s32.totalorder %s17, 1
      %p175 = por %p173, %p174
      %p176 = scmp.ne.s32.totalorder %s168, %s171
      %p177 = scmp.eq.s32.totalorder %s17, 0
      %p178 = por %p176, %p177
      %p179 = scmp.ne.s32.totalorder %s168, %s171
      %p180 = scmp.eq.s32.totalorder %s22, 1
      %p181 = por %p179, %p180
      %p182 = scmp.ne.s32.totalorder %s171, %s172
      %p183 = scmp.eq.s32.totalorder %s22, 0
      %p184 = por %p182, %p183
      %p185 = scmp.ne.s32.totalorder %s171, %s172
      %p186 = scmp.eq.s32.totalorder %s23, 1
      %p187 = por %p185, %p186
      %p189 = scmp.ne.s32.totalorder %s172, %s188
      %p190 = scmp.eq.s32.totalorder %s23, 0
      %p191 = por %p189, %p190
      %s192 = ssub.s32 %s17, %s24
      %p193 = scmp.eq.s32.totalorder %s192, 0
      %s195 = sadd.s32 %s194, 1
      %s196 = scalar_select %p193, %s194, %s195
      %p199 = pneg %p193
      %p200 = scmp.eq.s32.totalorder %s17, 1
      %p201 = por %p199, %p200
      %p202 = scmp.ne.s32.totalorder %s194, %s197
      %p203 = scmp.eq.s32.totalorder %s17, 0
      %p204 = por %p202, %p203
      %p205 = scmp.ne.s32.totalorder %s194, %s197
      %p206 = scmp.eq.s32.totalorder %s22, 1
      %p207 = por %p205, %p206
      %p208 = scmp.ne.s32.totalorder %s197, %s198
      %p209 = scmp.eq.s32.totalorder %s22, 0
      %p210 = por %p208, %p209
      %p211 = scmp.ne.s32.totalorder %s197, %s198
      %p212 = scmp.eq.s32.totalorder %s23, 1
      %p213 = por %p211, %p212
      %p215 = scmp.ne.s32.totalorder %s198, %s214
      %p216 = scmp.eq.s32.totalorder %s23, 0
      %p217 = por %p215, %p216
      %s218 = ssub.s32 %s17, %s24
      %p219 = scmp.eq.s32.totalorder %s218, 0
      %s221 = sadd.s32 %s220, 1
      %s222 = scalar_select %p219, %s220, %s221
      %p225 = pneg %p219
      %p226 = scmp.eq.s32.totalorder %s17, 1
      %p227 = por %p225, %p226
      %p228 = scmp.ne.s32.totalorder %s220, %s223
      %p229 = scmp.eq.s32.totalorder %s17, 0
      %p230 = por %p228, %p229
      %p231 = scmp.ne.s32.totalorder %s220, %s223
      %p232 = scmp.eq.s32.totalorder %s22, 1
      %p233 = por %p231, %p232
      %p234 = scmp.ne.s32.totalorder %s223, %s224
      %p235 = scmp.eq.s32.totalorder %s22, 0
      %p236 = por %p234, %p235
      %p237 = scmp.ne.s32.totalorder %s223, %s224
      %p238 = scmp.eq.s32.totalorder %s23, 1
      %p239 = por %p237, %p238
      %p241 = scmp.ne.s32.totalorder %s224, %s240
      %p242 = scmp.eq.s32.totalorder %s23, 0
      %p243 = por %p241, %p242
      %s244 = ssub.s32 %s17, %s24
      %p245 = scmp.eq.s32.totalorder %s244, 0
      %s247 = sadd.s32 %s246, 1
      %s248 = scalar_select %p245, %s246, %s247
      %p251 = pneg %p245
      %p252 = scmp.eq.s32.totalorder %s17, 1
      %p253 = por %p251, %p252
      %p254 = scmp.ne.s32.totalorder %s246, %s249
      %p255 = scmp.eq.s32.totalorder %s17, 0
      %p256 = por %p254, %p255
      %p257 = scmp.ne.s32.totalorder %s246, %s249
      %p258 = scmp.eq.s32.totalorder %s22, 1
      %p259 = por %p257, %p258
      %p260 = scmp.ne.s32.totalorder %s249, %s250
      %p261 = scmp.eq.s32.totalorder %s22, 0
      %p262 = por %p260, %p261
      %p263 = scmp.ne.s32.totalorder %s249, %s250
      %p264 = scmp.eq.s32.totalorder %s23, 1
      %p265 = por %p263, %p264
      %p267 = scmp.ne.s32.totalorder %s250, %s266
      %p268 = scmp.eq.s32.totalorder %s23, 0
      %p269 = por %p267, %p268
      %p270 = scmp.le.s32.totalorder 1, %s17
      %p271 = scmp.lt.s32.totalorder %s17, 3
      %p272 = pnand %p270, %p271
      %p273 = pneg %p272
      // Predicated region
      $region9: #{basic_block_forward.3} parent=5 // pred_check
        _
      $region10: #{basic_block_forward.3} parent=5 // pred_check_branch
        %275 = sbr.rel (%p272) target = $region12
      $region11: #{basic_block_forward.3} parent=5 // pred_region
        %s276 = ssub.s32 %s17, 1
        // Predicated region
        $region13: #{basic_block_forward.3} parent=11 // pred_check
          %p277 = pneg %p38
        $region14: #{basic_block_forward.3} parent=11 // pred_check_branch
          %279 = sbr.rel (%p277) target = $region16
        $region15: #{basic_block_forward.3} parent=11 // pred_region
          %s281 = ssub.s32 16, 16
          %282 = vsyncadd [#allocation3], %s281
          %s284 = sshll.u32 %s0, 4
          %s285 = int_to_ptr.vmem [resolvable:$true] %s284
          %287 = dma.vmem_to_smem %s285, 16, [#allocation2], [#allocation3]
        $region16: #{basic_block_forward.3} parent=11 // pred_fallthru
          _
        // Predicated region
        $region17: #{basic_block_forward.3} parent=11 // pred_check
          %p288 = pneg %p85
        $region18: #{basic_block_forward.3} parent=11 // pred_check_branch
          %290 = sbr.rel (%p288) target = $region20
        $region19: #{basic_block_forward.3} parent=11 // pred_region
          _
        $region20: #{basic_block_forward.3} parent=11 // pred_fallthru
          _
        // Predicated region
        $region21: #{basic_block_forward.3} parent=11 // pred_check
          %p291 = pneg %p132
        $region22: #{basic_block_forward.3} parent=11 // pred_check_branch
          %293 = sbr.rel (%p291) target = $region24
        $region23: #{basic_block_forward.3} parent=11 // pred_region
          _
        $region24: #{basic_block_forward.3} parent=11 // pred_fallthru
          _
      $region12: #{basic_block_forward.3} parent=5 // pred_fallthru
        _
      %p294 = scmp.lt.s32.totalorder %s17, 2
      // Predicated region
      $region25: #{basic_block_forward.3} parent=5 // pred_check
        %p295 = pneg %p294
      $region26: #{basic_block_forward.3} parent=5 // pred_check_branch
        %297 = sbr.rel (%p295) target = $region28
      $region27: #{basic_block_forward.3} parent=5 // pred_region
        // Predicated region
        $region29: #{basic_block_forward.3} parent=27 // pred_check
          %p298 = pneg %p58
        $region30: #{basic_block_forward.3} parent=27 // pred_check_branch
          %300 = sbr.rel (%p298) target = $region32
        $region31: #{basic_block_forward.3} parent=27 // pred_region
          %s301 = smul.u32 8, %s17
          %p302 = scmp.lt.s32.totalorder %s301, 15
          %s303 = scalar_select %p302, %s301, 15
          %s304 = smul.addr %s303, 4
          %s305 = scalar_lea.vmem %s1, %s304
          %s306 = smul.u32 8, %s17
        $region32: #{basic_block_forward.3} parent=27 // pred_fallthru
          _
        // Predicated region
        $region33: #{basic_block_forward.3} parent=27 // pred_check
          %p307 = pneg %p105
        $region34: #{basic_block_forward.3} parent=27 // pred_check_branch
          %309 = sbr.rel (%p307) target = $region36
        $region35: #{basic_block_forward.3} parent=27 // pred_region
          %s310 = smul.u32 8, %s17
          %p311 = scmp.lt.s32.totalorder %s310, 15
          %s312 = scalar_select %p311, %s310, 15
          %s313 = smul.addr %s312, 4
          %s314 = scalar_lea.vmem %s3, %s313
          %s315 = smul.u32 8, %s17
        $region36: #{basic_block_forward.3} parent=27 // pred_fallthru
          _
        // Predicated region
        $region37: #{basic_block_forward.3} parent=27 // pred_check
          %p316 = pneg %p152
        $region38: #{basic_block_forward.3} parent=27 // pred_check_branch
          %318 = sbr.rel (%p316) target = $region40
        $region39: #{basic_block_forward.3} parent=27 // pred_region
          %s319 = smul.u32 8, %s17
          %p320 = scmp.lt.s32.totalorder %s319, 15
          %s321 = scalar_select %p320, %s319, 15
          %s322 = smul.addr %s321, 8
          %s323 = scalar_lea.vmem %s5, %s322
          %s324 = smul.u32 8, %s17
        $region40: #{basic_block_forward.3} parent=27 // pred_fallthru
          _
        // Predicated region
        $region41: #{basic_block_forward.3} parent=27 // pred_check
          %p325 = pneg %p178
        $region42: #{basic_block_forward.3} parent=27 // pred_check_branch
          %327 = sbr.rel (%p325) target = $region44
        $region43: #{basic_block_forward.3} parent=27 // pred_region
          %s328 = smul.u32 8, %s17
          %p329 = scmp.lt.s32.totalorder %s328, 15
          %s330 = scalar_select %p329, %s328, 15
          %s331 = smul.addr %s330, 4
          %s332 = scalar_lea.vmem %s6, %s331
          %s333 = smul.u32 8, %s17
        $region44: #{basic_block_forward.3} parent=27 // pred_fallthru
          _
      $region28: #{basic_block_forward.3} parent=5 // pred_fallthru
        _
      %p334 = scmp.le.s32.totalorder 1, %s17
      %p335 = scmp.lt.s32.totalorder %s17, 3
      %p336 = pnand %p334, %p335
      %p337 = pneg %p336
      // Predicated region
      $region45: #{basic_block_forward.3} parent=5 // pred_check
        _
      $region46: #{basic_block_forward.3} parent=5 // pred_check_branch
        %339 = sbr.rel (%p336) target = $region48
      $region47: #{basic_block_forward.3} parent=5 // pred_region
        %s340 = ssub.s32 %s17, 1
        // Predicated region
        $region49: #{basic_block_forward.3} parent=47 // pred_check
          %p341 = pneg %p38
        $region50: #{basic_block_forward.3} parent=47 // pred_check_branch
          %343 = sbr.rel (%p341) target = $region52
        $region51: #{basic_block_forward.3} parent=47 // pred_region
          %344 = dma.done [#allocation3], 16
        $region52: #{basic_block_forward.3} parent=47 // pred_fallthru
          _
        %345 = sfence
        %p346 = pneg %p38
        %p347 = pneg %p35
        %s348 = smul.u32 8, %s22
        %p349 = scmp.lt.s32.totalorder %s348, 15
        %s350 = scalar_select %p349, %s348, 15
        %s351 = smul.addr %s350, 4
        %s352 = scalar_lea.vmem %s1, %s351
        %p353 = pneg %p64
        %p354 = pneg %p61
        %p355 = pneg %p85
        %p356 = pneg %p82
        %s357 = smul.u32 8, %s22
        %p358 = scmp.lt.s32.totalorder %s357, 15
        %s359 = scalar_select %p358, %s357, 15
        %s360 = smul.addr %s359, 4
        %s361 = scalar_lea.vmem %s3, %s360
        %p362 = pneg %p111
        %p363 = pneg %p108
        %p364 = pneg %p132
        %p365 = pneg %p129
        %s366 = smul.u32 8, %s22
        %p367 = scmp.lt.s32.totalorder %s366, 15
        %s368 = scalar_select %p367, %s366, 15
        %s369 = smul.addr %s368, 8
        %s370 = scalar_lea.vmem %s5, %s369
        %p371 = pneg %p158
        %p372 = pneg %p155
        %s373 = smul.u32 8, %s22
        %p374 = scmp.lt.s32.totalorder %s373, 15
        %s375 = scalar_select %p374, %s373, 15
        %s376 = smul.addr %s375, 4
        %s377 = scalar_lea.vmem %s6, %s376
        %p378 = pneg %p184
        %p379 = pneg %p181
        %p380 = pneg %p210
        %p381 = pneg %p207
        %s382 = smul.u32 8, %s22
        %p383 = scmp.lt.s32.totalorder %s382, 15
        %s384 = scalar_select %p383, %s382, 15
        %s385 = smul.addr %s384, 4
        %s386 = scalar_lea.vmem %s7, %s385
        %p387 = pneg %p236
        %p388 = pneg %p233
        %s389 = smul.u32 8, %s22
        %p390 = scmp.lt.s32.totalorder %s389, 15
        %s391 = scalar_select %p390, %s389, 15
        %s392 = smul.addr %s391, 8
        %s393 = scalar_lea.vmem %s8, %s392
        %p394 = pneg %p262
        %p395 = pneg %p259
        %s396 = smul.u32 8, %s22
        %p397 = scmp.lt.s32.totalorder %s396, 15
        %s398 = scalar_select %p397, %s396, 15
        %s399 = smul.addr %s398, 4
        %s400 = scalar_lea.vmem %s9, %s399
        %s401 = smul.u32 8, %s22
        %p402 = scmp.lt.s32.totalorder %s401, 15
        %s403 = scalar_select %p402, %s401, 15
        %s404 = smul.addr %s403, 4
        %s405 = scalar_lea.vmem %s1, %s404
        %s406 = smul.u32 8, %s22
        %s407 = smul.u32 8, %s22
        %p408 = scmp.lt.s32.totalorder %s407, 15
        %s409 = scalar_select %p408, %s407, 15
        %s410 = smul.addr %s409, 4
        %s411 = scalar_lea.vmem %s3, %s410
        %s412 = smul.u32 8, %s22
        %s413 = smul.u32 8, %s22
        %p414 = scmp.lt.s32.totalorder %s413, 15
        %s415 = scalar_select %p414, %s413, 15
        %s416 = smul.addr %s415, 8
        %s417 = scalar_lea.vmem %s5, %s416
        %s418 = smul.u32 8, %s22
        %s419 = smul.u32 8, %s22
        %p420 = scmp.lt.s32.totalorder %s419, 15
        %s421 = scalar_select %p420, %s419, 15
        %s422 = smul.addr %s421, 4
        %s423 = scalar_lea.vmem %s6, %s422
        %s424 = smul.u32 8, %s22
        %s425 = smul.u32 8, %s22
        %p426 = scmp.lt.s32.totalorder %s425, 15
        %s427 = scalar_select %p426, %s425, 15
        %s428 = smul.addr %s427, 4
        %s429 = scalar_lea.vmem %s7, %s428
        %s430 = smul.u32 8, %s22
        %s431 = smul.u32 8, %s22
        %p432 = scmp.lt.s32.totalorder %s431, 15
        %s433 = scalar_select %p432, %s431, 15
        %s434 = smul.addr %s433, 8
        %s435 = scalar_lea.vmem %s8, %s434
        %s436 = smul.u32 8, %s22
        %s437 = smul.u32 8, %s22
        %p438 = scmp.lt.s32.totalorder %s437, 15
        %s439 = scalar_select %p438, %s437, 15
        %s440 = smul.addr %s439, 4
        %s441 = scalar_lea.vmem %s9, %s440
        %s442 = smul.u32 8, %s22
        %s444 = sld [smem:[#allocation2]]
        %s445 = sld [smem:[#allocation2 + $0x1]]
        %s446 = sld [smem:[#allocation2 + $0x2]]
        %v447 = vld [vmem:[%s405] sm:$0xf]
        %v448 = vld [vmem:[%s405 + $0x4] sm:$0xf]
        %v449 = vld [vmem:[%s405 + $0x8] sm:$0xf]
        %v450 = vld [vmem:[%s405 + $0xc] sm:$0xf]
        %v451 = vld [vmem:[%s405 + $0x10] sm:$0xf]
        %v452 = vld [vmem:[%s405 + $0x14] sm:$0xf]
        %v453 = vld [vmem:[%s405 + $0x18] sm:$0xf]
        %v454 = vld [vmem:[%s405 + $0x1c] sm:$0xf]
        %v455 = vld [vmem:[%s2] sm:$0xf]
        %v456 = vld [vmem:[%s2 + $0x4] sm:$0xf]
        %v457 = vld [vmem:[%s2 + $0x8] sm:$0xf]
        %v458 = vld [vmem:[%s2 + $0xc] sm:$0xf]
        %v459 = vld [vmem:[%s2 + $0x10] sm:$0xf]
        %v460 = vld [vmem:[%s2 + $0x14] sm:$0xf]
        %v461 = vld [vmem:[%s2 + $0x18] sm:$0xf]
        %v462 = vld [vmem:[%s2 + $0x1c] sm:$0xf]
        %v463 = vld [vmem:[%s2 + $0x20] sm:$0xf]
        %v464 = vld [vmem:[%s411] sm:$0xf]
        %v465 = vld [vmem:[%s411 + $0x4] sm:$0xf]
        %v466 = vld [vmem:[%s411 + $0x8] sm:$0xf]
        %v467 = vld [vmem:[%s411 + $0xc] sm:$0xf]
        %v468 = vld [vmem:[%s411 + $0x10] sm:$0xf]
        %v469 = vld [vmem:[%s411 + $0x14] sm:$0xf]
        %v470 = vld [vmem:[%s411 + $0x18] sm:$0xf]
        %v471 = vld [vmem:[%s411 + $0x1c] sm:$0xf]
        %v472 = vld [vmem:[%s4] sm:$0x3]
        %v481 = vunpack.c.l.b16 %v464
        %v482 = vunpack.c.l.b16 %v465
        %v483 = vunpack.c.l.b16 %v466
        %v484 = vunpack.c.l.b16 %v467
        %v485 = vunpack.c.l.b16 %v468
        %v486 = vunpack.c.l.b16 %v469
        %v487 = vunpack.c.l.b16 %v470
        %v488 = vunpack.c.l.b16 %v471
        %v489 = vpack.c.b16 %v482, %v481
        %v490 = vpack.c.b16 %v484, %v483
        %v491 = vpack.c.b16 %v486, %v485
        %v492 = vpack.c.b16 %v488, %v487
        %vm493 = vcmask 31744
        %v495 = vsel %vm493, %v489, 0
        %v498 = vsel %vm493, %v490, 0
        %v501 = vsel %vm493, %v491, 0
        %v504 = vsel %vm493, %v492, 0
        %vm506 = vcmask 1041408
        %v508 = vsel %vm506, %v472, 0
        %510 = vmatprep.subr.bf16.mxu0 0
        %511 = vmatpush1.bf16.msra.mxu0 %v508
        %512 = vmatprep.subr.bf16.mxu0 0
        %513 = vmatpush1.bf16.msra.mxu0 0
        %514 = vmatprep.subr.bf16.mxu0 0
        %515 = vmatpush1.bf16.msra.mxu0 0
        %516 = vmatprep.subr.bf16.mxu0 0
        %517 = vmatpush1.bf16.msra.mxu0 0
        %518 = vmatprep.subr.bf16.mxu0 0
        %519 = vmatpush1.bf16.msra.mxu0 0
        %520 = vmatprep.subr.bf16.mxu0 0
        %521 = vmatpush1.bf16.msra.mxu0 0
        %522 = vmatprep.subr.bf16.mxu0 0
        %523 = vmatpush1.bf16.msra.mxu0 0
        %524 = vmatprep.subr.bf16.mxu0 0
        %525 = vmatpush1.bf16.msra.mxu0 0
        %526 = vmatprep.subr.bf16.mxu0 0
        %527 = vmatpush1.bf16.msra.mxu0 0
        %528 = vmatprep.subr.bf16.mxu0 0
        %529 = vmatpush1.bf16.msra.mxu0 0
        %530 = vmatprep.subr.bf16.mxu0 0
        %531 = vmatpush1.bf16.msra.mxu0 0
        %532 = vmatprep.subr.bf16.mxu0 0
        %533 = vmatpush1.bf16.msra.mxu0 0
        %534 = vmatprep.subr.bf16.mxu0 0
        %535 = vmatpush1.bf16.msra.mxu0 0
        %536 = vmatprep.subr.bf16.mxu0 0
        %537 = vmatpush1.bf16.msra.mxu0 0
        %538 = vmatprep.subr.bf16.mxu0 0
        %539 = vmatpush1.bf16.msra.mxu0 0
        %540 = vmatprep.subr.bf16.mxu0 0
        %541 = vmatpush1.bf16.msra.mxu0 0
        %542 = vmatprep.mubr.bf16.mxu0 0
        %543 = vmatmul.mubr.bf16.gmra.mrb[0].mxu0 %v495
        %v544 = vpop.f32.mrb[0].mxu0
        %v545 = vadd.f32 0.0, %v544
        %v546 = vpop.f32.mrb[0].mxu0
        %v547 = vpop.f32.mrb[0].mxu0
        %v548 = vadd.f32 0.0, %v547
        %v549 = vpop.f32.mrb[0].mxu0
        %550 = vmatprep.mubr.bf16.mxu0 0
        %551 = vmatmul.mubr.bf16.gmra.mrb[0].mxu0 %v498
        %v552 = vpop.f32.mrb[0].mxu0
        %v553 = vadd.f32 0.0, %v552
        %v554 = vpop.f32.mrb[0].mxu0
        %v555 = vpop.f32.mrb[0].mxu0
        %v556 = vadd.f32 0.0, %v555
        %v557 = vpop.f32.mrb[0].mxu0
        %558 = vmatprep.mubr.bf16.mxu0 0
        %559 = vmatmul.mubr.bf16.gmra.mrb[0].mxu0 %v501
        %v560 = vpop.f32.mrb[0].mxu0
        %v561 = vadd.f32 0.0, %v560
        %v562 = vpop.f32.mrb[0].mxu0
        %v563 = vpop.f32.mrb[0].mxu0
        %v564 = vadd.f32 0.0, %v563
        %v565 = vpop.f32.mrb[0].mxu0
        %566 = vmatprep.mubr.bf16.mxu0 0
        %567 = vmatmul.mubr.bf16.gmra.mrb[0].mxu0 %v504
        %v568 = vpop.f32.mrb[0].mxu0
        %v569 = vadd.f32 0.0, %v568
        %v570 = vpop.f32.mrb[0].mxu0
        %v571 = vpop.f32.mrb[0].mxu0
        %v572 = vadd.f32 0.0, %v571
        %v573 = vpop.f32.mrb[0].mxu0
        %574 = vdwg.mxu0
        %v583 = vunpack.c.l.b16 %v447
        %v584 = vunpack.c.l.b16 %v448
        %v585 = vunpack.c.l.b16 %v449
        %v586 = vunpack.c.l.b16 %v450
        %v587 = vunpack.c.l.b16 %v451
        %v588 = vunpack.c.l.b16 %v452
        %v589 = vunpack.c.l.b16 %v453
        %v590 = vunpack.c.l.b16 %v454
        %v591 = vpack.c.b16 %v584, %v583
        %v592 = vpack.c.b16 %v586, %v585
        %v593 = vpack.c.b16 %v588, %v587
        %v594 = vpack.c.b16 %v590, %v589
        %v604 = vunpack.c.l.b16 %v455
        %v605 = vunpack.c.l.b16 %v456
        %v606 = vunpack.c.l.b16 %v457
        %v607 = vunpack.c.l.b16 %v458
        %v608 = vunpack.c.l.b16 %v459
        %v609 = vunpack.c.l.b16 %v460
        %v610 = vunpack.c.l.b16 %v461
        %v611 = vunpack.c.l.b16 %v462
        %v612 = vunpack.c.l.b16 %v463
        %v613 = vpack.c.b16 %v605, %v604
        %v614 = vpack.c.b16 %v607, %v606
        %v615 = vpack.c.b16 %v609, %v608
        %v616 = vpack.c.b16 %v611, %v610
        %v617 = vpack.c.b16 %v612, %v612
        %vm622 = vcmask 588800
        %v624 = vsel %vm622, %v591, 0
        %v627 = vsel %vm622, %v592, 0
        %v630 = vsel %vm622, %v593, 0
        %v633 = vsel %vm622, %v594, 0
        %vm635 = vcmask 1043456
        %v637 = vsel %vm635, %v617, 0
        %639 = vmatprep.subr.bf16.mxu0 0
        %640 = vmatpush1.bf16.msra.mxu0 %v613
        %641 = vmatprep.subr.bf16.mxu0 0
        %642 = vmatpush1.bf16.msra.mxu0 %v614
        %643 = vmatprep.subr.bf16.mxu0 0
        %644 = vmatpush1.bf16.msra.mxu0 %v615
        %645 = vmatprep.subr.bf16.mxu0 0
        %646 = vmatpush1.bf16.msra.mxu0 %v616
        %647 = vmatprep.subr.bf16.mxu0 0
        %648 = vmatpush1.bf16.msra.mxu0 %v637
        %649 = vmatprep.subr.bf16.mxu0 0
        %650 = vmatpush1.bf16.msra.mxu0 0
        %651 = vmatprep.subr.bf16.mxu0 0
        %652 = vmatpush1.bf16.msra.mxu0 0
        %653 = vmatprep.subr.bf16.mxu0 0
        %654 = vmatpush1.bf16.msra.mxu0 0
        %655 = vmatprep.subr.bf16.mxu0 0
        %656 = vmatpush1.bf16.msra.mxu0 0
        %657 = vmatprep.subr.bf16.mxu0 0
        %658 = vmatpush1.bf16.msra.mxu0 0
        %659 = vmatprep.subr.bf16.mxu0 0
        %660 = vmatpush1.bf16.msra.mxu0 0
        %661 = vmatprep.subr.bf16.mxu0 0
        %662 = vmatpush1.bf16.msra.mxu0 0
        %663 = vmatprep.subr.bf16.mxu0 0
        %664 = vmatpush1.bf16.msra.mxu0 0
        %665 = vmatprep.subr.bf16.mxu0 0
        %666 = vmatpush1.bf16.msra.mxu0 0
        %667 = vmatprep.subr.bf16.mxu0 0
        %668 = vmatpush1.bf16.msra.mxu0 0
        %669 = vmatprep.subr.bf16.mxu0 0
        %670 = vmatpush1.bf16.msra.mxu0 0
        %671 = vmatprep.mubr.bf16.mxu0 0
        %672 = vmatmul.mubr.bf16.gmra.mrb[0].mxu0 %v624
        %v673 = vpop.f32.mrb[0].mxu0
        %v674 = vadd.f32 %v545, %v673
        %v675 = vpop.f32.mrb[0].mxu0
        %v676 = vpop.f32.mrb[0].mxu0
        %v677 = vadd.f32 %v548, %v676
        %v678 = vpop.f32.mrb[0].mxu0
        %679 = vmatprep.mubr.bf16.mxu0 0
        %680 = vmatmul.mubr.bf16.gmra.mrb[0].mxu0 %v627
        %v681 = vpop.f32.mrb[0].mxu0
        %v682 = vadd.f32 %v553, %v681
        %v683 = vpop.f32.mrb[0].mxu0
        %v684 = vpop.f32.mrb[0].mxu0
        %v685 = vadd.f32 %v556, %v684
        %v686 = vpop.f32.mrb[0].mxu0
        %687 = vmatprep.mubr.bf16.mxu0 0
        %688 = vmatmul.mubr.bf16.gmra.mrb[0].mxu0 %v630
        %v689 = vpop.f32.mrb[0].mxu0
        %v690 = vadd.f32 %v561, %v689
        %v691 = vpop.f32.mrb[0].mxu0
        %v692 = vpop.f32.mrb[0].mxu0
        %v693 = vadd.f32 %v564, %v692
        %v694 = vpop.f32.mrb[0].mxu0
        %695 = vmatprep.mubr.bf16.mxu0 0
        %696 = vmatmul.mubr.bf16.gmra.mrb[0].mxu0 %v633
        %v697 = vpop.f32.mrb[0].mxu0
        %v698 = vadd.f32 %v569, %v697
        %v699 = vpop.f32.mrb[0].mxu0
        %v700 = vpop.f32.mrb[0].mxu0
        %v701 = vadd.f32 %v572, %v700
        %v702 = vpop.f32.mrb[0].mxu0
        %703 = vdwg.mxu0
        %v704 = vld [vmem:[%s417] sm:$0xff]
        %v705 = vld [vmem:[%s417 + $0x8] sm:$0xff]
        %v706 = vld [vmem:[%s417 + $0x10] sm:$0xff]
        %v707 = vld [vmem:[%s417 + $0x18] sm:$0xff]
        %v708 = vld [vmem:[%s417 + $0x20] sm:$0xff]
        %v709 = vld [vmem:[%s417 + $0x28] sm:$0xff]
        %v710 = vld [vmem:[%s417 + $0x30] sm:$0xff]
        %v711 = vld [vmem:[%s417 + $0x38] sm:$0xff]
        %v712 = vstv %s444
        %v713 = vmul.f32 %v712, %v704
        %v714 = vmul.f32 %v712, %v705
        %v715 = vmul.f32 %v712, %v706
        %v716 = vmul.f32 %v712, %v707
        %v717 = vmul.f32 %v712, %v708
        %v718 = vmul.f32 %v712, %v709
        %v719 = vmul.f32 %v712, %v710
        %v720 = vmul.f32 %v712, %v711
        %v721 = vadd.f32 %v713, %v674
        %v722 = vadd.f32 %v714, %v677
        %v723 = vadd.f32 %v715, %v682
        %v724 = vadd.f32 %v716, %v685
        %v725 = vadd.f32 %v717, %v690
        %v726 = vadd.f32 %v718, %v693
        %v727 = vadd.f32 %v719, %v698
        %v728 = vadd.f32 %v720, %v701
        %v729 = vstv %s445
        %vm730 = vcmp.gt.f32.partialorder %v721, %v729
        %vm731 = vcmp.gt.f32.partialorder %v722, %v729
        %vm732 = vcmp.gt.f32.partialorder %v723, %v729
        %vm733 = vcmp.gt.f32.partialorder %v724, %v729
        %vm734 = vcmp.gt.f32.partialorder %v725, %v729
        %vm735 = vcmp.gt.f32.partialorder %v726, %v729
        %vm736 = vcmp.gt.f32.partialorder %v727, %v729
        %vm737 = vcmp.gt.f32.partialorder %v728, %v729
        %v738 = vsel %vm730, 1, 0
        %v739 = vsel %vm731, 1, 0
        %v740 = vsel %vm732, 1, 0
        %v741 = vsel %vm733, 1, 0
        %v742 = vsel %vm734, 1, 0
        %v743 = vsel %vm735, 1, 0
        %v744 = vsel %vm736, 1, 0
        %v745 = vsel %vm737, 1, 0
        %v746 = vcvt.s32.f32 %v738
        %v747 = vcvt.s32.f32 %v739
        %v748 = vcvt.s32.f32 %v740
        %v749 = vcvt.s32.f32 %v741
        %v750 = vcvt.s32.f32 %v742
        %v751 = vcvt.s32.f32 %v743
        %v752 = vcvt.s32.f32 %v744
        %v753 = vcvt.s32.f32 %v745
        %v754 = vmul.f32 %v729, %v746
        %v755 = vmul.f32 %v729, %v747
        %v756 = vmul.f32 %v729, %v748
        %v757 = vmul.f32 %v729, %v749
        %v758 = vmul.f32 %v729, %v750
        %v759 = vmul.f32 %v729, %v751
        %v760 = vmul.f32 %v729, %v752
        %v761 = vmul.f32 %v729, %v753
        %v762 = vsub.f32 %v721, %v754
        %v763 = vsub.f32 %v722, %v755
        %v764 = vsub.f32 %v723, %v756
        %v765 = vsub.f32 %v724, %v757
        %v766 = vsub.f32 %v725, %v758
        %v767 = vsub.f32 %v726, %v759
        %v768 = vsub.f32 %v727, %v760
        %v769 = vsub.f32 %v728, %v761
        %770 = vst [vmem:[%s435] sm:$0xff] %v762
        %771 = vst [vmem:[%s435 + $0x8] sm:$0xff] %v763
        %772 = vst [vmem:[%s435 + $0x10] sm:$0xff] %v764
        %773 = vst [vmem:[%s435 + $0x18] sm:$0xff] %v765
        %774 = vst [vmem:[%s435 + $0x20] sm:$0xff] %v766
        %775 = vst [vmem:[%s435 + $0x28] sm:$0xff] %v767
        %776 = vst [vmem:[%s435 + $0x30] sm:$0xff] %v768
        %777 = vst [vmem:[%s435 + $0x38] sm:$0xff] %v769
        %v778 = vld [vmem:[%s423] sm:$0xf]
        %v779 = vld [vmem:[%s423 + $0x4] sm:$0xf]
        %v780 = vld [vmem:[%s423 + $0x8] sm:$0xf]
        %v781 = vld [vmem:[%s423 + $0xc] sm:$0xf]
        %v782 = vld [vmem:[%s423 + $0x10] sm:$0xf]
        %v783 = vld [vmem:[%s423 + $0x14] sm:$0xf]
        %v784 = vld [vmem:[%s423 + $0x18] sm:$0xf]
        %v785 = vld [vmem:[%s423 + $0x1c] sm:$0xf]
        %v786 = vunpack.c.l.bf16 %v778
        %v787 = vunpack.c.l.bf16 %v779
        %v788 = vunpack.c.l.bf16 %v780
        %v789 = vunpack.c.l.bf16 %v781
        %v790 = vunpack.c.l.bf16 %v782
        %v791 = vunpack.c.l.bf16 %v783
        %v792 = vunpack.c.l.bf16 %v784
        %v793 = vunpack.c.l.bf16 %v785
        %v794 = vstv %s446
        %v795 = vsel %vm730, %v794, %v786
        %v796 = vsel %vm731, %v794, %v787
        %v797 = vsel %vm732, %v794, %v788
        %v798 = vsel %vm733, %v794, %v789
        %v799 = vsel %vm734, %v794, %v790
        %v800 = vsel %vm735, %v794, %v791
        %v801 = vsel %vm736, %v794, %v792
        %v802 = vsel %vm737, %v794, %v793
        %v803 = vpack.c.bf16 %v796, %v795
        %v804 = vpack.c.bf16 %v798, %v797
        %v805 = vpack.c.bf16 %v800, %v799
        %v806 = vpack.c.bf16 %v802, %v801
        %v811 = vunpack.c.l.b16 %v803
        %v812 = vunpack.c.h.b16 %v803
        %v813 = vunpack.c.l.b16 %v804
        %v814 = vunpack.c.h.b16 %v804
        %v815 = vunpack.c.l.b16 %v805
        %v816 = vunpack.c.h.b16 %v805
        %v817 = vunpack.c.l.b16 %v806
        %v818 = vunpack.c.h.b16 %v806
        %v819 = vpack.c.b16 %v811, %v811
        %v820 = vpack.c.b16 %v812, %v812
        %v821 = vpack.c.b16 %v813, %v813
        %v822 = vpack.c.b16 %v814, %v814
        %v823 = vpack.c.b16 %v815, %v815
        %v824 = vpack.c.b16 %v816, %v816
        %v825 = vpack.c.b16 %v817, %v817
        %v826 = vpack.c.b16 %v818, %v818
        %835 = vst [vmem:[%s441] sm:$0xf] %v819
        %836 = vst [vmem:[%s441 + $0x4] sm:$0xf] %v820
        %837 = vst [vmem:[%s441 + $0x8] sm:$0xf] %v821
        %838 = vst [vmem:[%s441 + $0xc] sm:$0xf] %v822
        %839 = vst [vmem:[%s441 + $0x10] sm:$0xf] %v823
        %840 = vst [vmem:[%s441 + $0x14] sm:$0xf] %v824
        %841 = vst [vmem:[%s441 + $0x18] sm:$0xf] %v825
        %842 = vst [vmem:[%s441 + $0x1c] sm:$0xf] %v826
        %v843 = vpack.c.bf16 %v747, %v746
        %v844 = vpack.c.bf16 %v749, %v748
        %v845 = vpack.c.bf16 %v751, %v750
        %v846 = vpack.c.bf16 %v753, %v752
        %v851 = vunpack.c.l.b16 %v843
        %v852 = vunpack.c.h.b16 %v843
        %v853 = vunpack.c.l.b16 %v844
        %v854 = vunpack.c.h.b16 %v844
        %v855 = vunpack.c.l.b16 %v845
        %v856 = vunpack.c.h.b16 %v845
        %v857 = vunpack.c.l.b16 %v846
        %v858 = vunpack.c.h.b16 %v846
        %v859 = vpack.c.b16 %v851, %v851
        %v860 = vpack.c.b16 %v852, %v852
        %v861 = vpack.c.b16 %v853, %v853
        %v862 = vpack.c.b16 %v854, %v854
        %v863 = vpack.c.b16 %v855, %v855
        %v864 = vpack.c.b16 %v856, %v856
        %v865 = vpack.c.b16 %v857, %v857
        %v866 = vpack.c.b16 %v858, %v858
        %875 = vst [vmem:[%s429] sm:$0xf] %v859
        %876 = vst [vmem:[%s429 + $0x4] sm:$0xf] %v860
        %877 = vst [vmem:[%s429 + $0x8] sm:$0xf] %v861
        %878 = vst [vmem:[%s429 + $0xc] sm:$0xf] %v862
        %879 = vst [vmem:[%s429 + $0x10] sm:$0xf] %v863
        %880 = vst [vmem:[%s429 + $0x14] sm:$0xf] %v864
        %881 = vst [vmem:[%s429 + $0x18] sm:$0xf] %v865
        %882 = vst [vmem:[%s429 + $0x1c] sm:$0xf] %v866
        %s883 = smul.u32 8, %s22
        %p884 = scmp.lt.s32.totalorder %s883, 15
        %s885 = scalar_select %p884, %s883, 15
        %s886 = smul.addr %s885, 4
        %s887 = scalar_lea.vmem %s7, %s886
        %s888 = smul.u32 8, %s22
        %p889 = scmp.lt.s32.totalorder %s888, 15
        %s890 = scalar_select %p889, %s888, 15
        %s891 = smul.addr %s890, 8
        %s892 = scalar_lea.vmem %s8, %s891
        %s893 = smul.u32 8, %s22
        %p894 = scmp.lt.s32.totalorder %s893, 15
        %s895 = scalar_select %p894, %s893, 15
        %s896 = smul.addr %s895, 4
        %s897 = scalar_lea.vmem %s9, %s896
        // Predicated region
        $region53: #{basic_block_forward.3} parent=47 // pred_check
          %p898 = pneg %p207
        $region54: #{basic_block_forward.3} parent=47 // pred_check_branch
          %900 = sbr.rel (%p898) target = $region56
        $region55: #{basic_block_forward.3} parent=47 // pred_region
          %s901 = smul.u32 8, %s22
        $region56: #{basic_block_forward.3} parent=47 // pred_fallthru
          _
        // Predicated region
        $region57: #{basic_block_forward.3} parent=47 // pred_check
          %p902 = pneg %p233
        $region58: #{basic_block_forward.3} parent=47 // pred_check_branch
          %904 = sbr.rel (%p902) target = $region60
        $region59: #{basic_block_forward.3} parent=47 // pred_region
          %s905 = smul.u32 8, %s22
        $region60: #{basic_block_forward.3} parent=47 // pred_fallthru
          _
        // Predicated region
        $region61: #{basic_block_forward.3} parent=47 // pred_check
          %p906 = pneg %p259
        $region62: #{basic_block_forward.3} parent=47 // pred_check_branch
          %908 = sbr.rel (%p906) target = $region64
        $region63: #{basic_block_forward.3} parent=47 // pred_region
          %s909 = smul.u32 8, %s22
        $region64: #{basic_block_forward.3} parent=47 // pred_fallthru
          _
      $region48: #{basic_block_forward.3} parent=5 // pred_fallthru
        _
      %p910 = scmp.le.s32.totalorder 2, %s17
      // Predicated region
      $region65: #{basic_block_forward.3} parent=5 // pred_check
        %p911 = pneg %p910
      $region66: #{basic_block_forward.3} parent=5 // pred_check_branch
        %913 = sbr.rel (%p911) target = $region68
      $region67: #{basic_block_forward.3} parent=5 // pred_region
        %s914 = ssub.s32 %s17, 2
        // Predicated region
        $region69: #{basic_block_forward.3} parent=67 // pred_check
          %p915 = pneg %p213
        $region70: #{basic_block_forward.3} parent=67 // pred_check_branch
          %917 = sbr.rel (%p915) target = $region72
        $region71: #{basic_block_forward.3} parent=67 // pred_region
          %s918 = smul.u32 8, %s23
          %p919 = scmp.lt.s32.totalorder %s918, 15
          %s920 = scalar_select %p919, %s918, 15
          %s921 = smul.addr %s920, 4
          %s922 = scalar_lea.vmem %s7, %s921
        $region72: #{basic_block_forward.3} parent=67 // pred_fallthru
          _
        // Predicated region
        $region73: #{basic_block_forward.3} parent=67 // pred_check
          %p923 = pneg %p239
        $region74: #{basic_block_forward.3} parent=67 // pred_check_branch
          %925 = sbr.rel (%p923) target = $region76
        $region75: #{basic_block_forward.3} parent=67 // pred_region
          %s926 = smul.u32 8, %s23
          %p927 = scmp.lt.s32.totalorder %s926, 15
          %s928 = scalar_select %p927, %s926, 15
          %s929 = smul.addr %s928, 8
          %s930 = scalar_lea.vmem %s8, %s929
        $region76: #{basic_block_forward.3} parent=67 // pred_fallthru
          _
        // Predicated region
        $region77: #{basic_block_forward.3} parent=67 // pred_check
          %p931 = pneg %p265
        $region78: #{basic_block_forward.3} parent=67 // pred_check_branch
          %933 = sbr.rel (%p931) target = $region80
        $region79: #{basic_block_forward.3} parent=67 // pred_region
          %s934 = smul.u32 8, %s23
          %p935 = scmp.lt.s32.totalorder %s934, 15
          %s936 = scalar_select %p935, %s934, 15
          %s937 = smul.addr %s936, 4
          %s938 = scalar_lea.vmem %s9, %s937
        $region80: #{basic_block_forward.3} parent=67 // pred_fallthru
          _
      $region68: #{basic_block_forward.3} parent=5 // pred_fallthru
        _
    $region6: #{basic_block_forward.3} parent=1 // loop_footer
      %s21 = sadd.s32 1, %s17
    $region7: #{basic_block_forward.3} parent=1 // loop_footer_branch
      %16 = sbr.rel target = $region3
    $region8: #{basic_block_forward.3} parent=1 // loop_exit
      _
    %939 = vsyncpa [#allocation3], 1
    %s940 = scalar_lea.sflag [#allocation3], 1
    %941 = vsyncpa %s940, 1

</llo_original>
